<compile_context>
chip_gen: v6e
topology: v6e:2x2x1
jax: 0.10.0
libtpu: 0.0.40
codegen_flags: <defaults>
</compile_context>

<pallas_src>
import math

import jax
import jax.numpy as jnp
from jax.experimental import pallas as pl
from jax.experimental.pallas import tpu as pltpu


def ffn_kernel(x_ref, w1_ref, b1_ref, w2_ref, b2_ref, o_ref, acc_ref):
    k = pl.program_id(1)

    @pl.when(k == 0)
    def _():
        acc_ref[...] = jnp.zeros_like(acc_ref)

    # First linear on this ffn_dim chunk (MXU, f32 accumulate) + bias + ReLU.
    h = jnp.dot(x_ref[...], w1_ref[...], preferred_element_type=jnp.float32)
    h = h + b1_ref[...].astype(jnp.float32)
    h = jnp.maximum(h, 0.0)
    # Dropout (p=0.1) -> identity (eval-mode semantics).

    # Second linear: accumulate this chunk's contribution in the f32 scratch.
    # Cast the activation back to the (bf16) input dtype so the MXU runs the
    # fast path; accumulation stays in f32.
    acc_ref[...] += jnp.dot(h.astype(x_ref.dtype), w2_ref[...],
                            preferred_element_type=jnp.float32)

    @pl.when(k == pl.num_programs(1) - 1)
    def _():
        out = acc_ref[...] + b2_ref[...].astype(jnp.float32)
        # Dropout (p=0.1) -> identity (eval-mode semantics).
        o_ref[...] = out.astype(o_ref.dtype)


def _pick_ffn_tile(ffn_dim, pref=512, align=128):
    """Largest multiple of `align` that divides ffn_dim and is <= pref.

    Exact division is required: padded reduction-axis chunks would add garbage
    contributions to the accumulator."""
    if ffn_dim <= pref or ffn_dim % align != 0:
        return ffn_dim
    t = (pref // align) * align
    while t >= align:
        if ffn_dim % t == 0:
            return t
        t -= align
    return ffn_dim


def ffn_forward(x, w1, b1, w2, b2, *, row_tile=256, ffn_tile=512,
                out_dtype=None):
    """x: [N, model_dim]; w1: [model_dim, ffn_dim]; b1: [1, ffn_dim];
       w2: [ffn_dim, model_dim]; b2: [1, model_dim]."""
    n, model_dim = x.shape
    ffn_dim = w1.shape[1]
    out_dtype = out_dtype or x.dtype

    # Row tile: many grid steps -> pipelined DMAs + megacore sharding on v7x.
    row_tile = min(row_tile, n)
    if row_tile != n:
        row_tile = max(16, (row_tile // 16) * 16)  # sublane-friendly
    # ffn_dim reduction tile (columns of W1 / rows of W2), must divide exactly.
    tk = _pick_ffn_tile(ffn_dim, pref=ffn_tile)

    grid = (pl.cdiv(n, row_tile), ffn_dim // tk)

    def nbytes(a):
        return a.size * a.dtype.itemsize

    cost = pl.CostEstimate(
        flops=2 * n * model_dim * ffn_dim * 2,  # two matmuls
        transcendentals=0,
        bytes_accessed=(nbytes(x) + nbytes(w1) + nbytes(b1) + nbytes(w2)
                        + nbytes(b2)
                        + n * model_dim * jnp.dtype(out_dtype).itemsize),
    )

    return pl.pallas_call(
        ffn_kernel,
        out_shape=jax.ShapeDtypeStruct((n, model_dim), out_dtype),
        grid_spec=pltpu.PrefetchScalarGridSpec(
            num_scalar_prefetch=0,
            grid=grid,
            in_specs=[
                pl.BlockSpec((row_tile, model_dim), lambda i, k: (i, 0)),
                pl.BlockSpec((model_dim, tk), lambda i, k: (0, k)),
                pl.BlockSpec((1, tk), lambda i, k: (0, k)),
                pl.BlockSpec((tk, model_dim), lambda i, k: (k, 0)),
                pl.BlockSpec((1, model_dim), lambda i, k: (0, 0)),
            ],
            out_specs=pl.BlockSpec((row_tile, model_dim), lambda i, k: (i, 0)),
            scratch_shapes=[pltpu.VMEM((row_tile, model_dim), jnp.float32)],
        ),
        compiler_params=pltpu.CompilerParams(
            dimension_semantics=("parallel", "arbitrary"),
            vmem_limit_bytes=48 * 1024 * 1024,  # headroom under v7x's 64 MiB
        ),
        cost_estimate=cost,
    )(x, w1, b1, w2, b2)


def init_linear_params(key, in_features, out_features, dtype=jnp.float32):
    """Deterministic init mimicking PyTorch nn.Linear defaults
    (kaiming-uniform weight, uniform bias in +-1/sqrt(fan_in))."""
    kw, kb = jax.random.split(key)
    bound = 1.0 / math.sqrt(in_features)
    # stored as [in, out] (transpose of torch's [out, in])
    w = jax.random.uniform(kw, (in_features, out_features), dtype,
                           minval=-bound, maxval=bound)
    b = jax.random.uniform(kb, (1, out_features), dtype,
                           minval=-bound, maxval=bound)
    return w, b


if __name__ == "__main__":
    # Lane-aligned dims (multiples of 128) per perf feedback; small overall.
    model_dim = 128
    ffn_dim = 1024          # -> 2 reduction (k) steps at the default tk cap
    batch, seq = 2, 256     # -> 512 rows -> 2 parallel row programs

    key = jax.random.PRNGKey(0)
    kx, k1, k2 = jax.random.split(key, 3)

    x_bsd = jax.random.normal(kx, (batch, seq, model_dim), jnp.float32)
    w1_f32, b1 = init_linear_params(k1, model_dim, ffn_dim)
    w2_f32, b2 = init_linear_params(k2, ffn_dim, model_dim)

    # bf16 MXU operands (f32 accumulation inside the kernel); biases stay f32.
    x = x_bsd.reshape(batch * seq, model_dim).astype(jnp.bfloat16)
    w1 = w1_f32.astype(jnp.bfloat16)
    w2 = w2_f32.astype(jnp.bfloat16)

    out = ffn_forward(x, w1, b1, w2, b2)
    out = out.reshape(batch, seq, model_dim)
    jax.block_until_ready(out)

    # Reference in plain JAX with the same bf16-operand / f32-accumulate recipe.
    h_ref = jnp.dot(x, w1, preferred_element_type=jnp.float32) + b1
    h_ref = jnp.maximum(h_ref, 0.0).astype(jnp.bfloat16)
    ref = jnp.dot(h_ref, w2, preferred_element_type=jnp.float32) + b2
    ref = ref.astype(out.dtype).reshape(batch, seq, model_dim)

    assert jnp.allclose(out.astype(jnp.float32), ref.astype(jnp.float32),
                        atol=3e-2, rtol=3e-2), "mismatch vs reference"

    print("KERNEL_OK")
</pallas_src>

<mosaic_0001>
module attributes {stable_mosaic.version = 11 : i64} {
  func.func @ffn_kernel(%arg0: i32, %arg1: i32, %arg2: memref<256x128xbf16, #tpu.memory_space<vmem>>, %arg3: memref<128x512xbf16, #tpu.memory_space<vmem>>, %arg4: memref<1x512xf32, #tpu.memory_space<vmem>>, %arg5: memref<512x128xbf16, #tpu.memory_space<vmem>>, %arg6: memref<1x128xf32, #tpu.memory_space<vmem>>, %arg7: memref<256x128xbf16, #tpu.memory_space<vmem>>, %arg8: memref<256x128xf32, #tpu.memory_space<vmem>>) attributes {dimension_semantics = [#tpu.dimension_semantics<parallel>, #tpu.dimension_semantics<arbitrary>], iteration_bounds = array<i64: 2, 2>, scalar_prefetch = 0 : i64, scratch_operands = 1 : i64, tpu.core_type = #tpu.core_type<tc>, window_params = [{transform_indices = @transform_0, window_bounds = array<i64: 256, 128>}, {transform_indices = @transform_1, window_bounds = array<i64: 128, 512>}, {transform_indices = @transform_2, window_bounds = array<i64: 1, 512>}, {transform_indices = @transform_3, window_bounds = array<i64: 512, 128>}, {pipeline_mode = #tpu.pipeline_mode<synchronous>, transform_indices = @transform_4, window_bounds = array<i64: 1, 128>}, {transform_indices = @transform_5, window_bounds = array<i64: 256, 128>}]} {
    %c0_i32 = arith.constant 0 : i32
    %0 = arith.cmpi eq, %arg1, %c0_i32 : i32
    %1 = arith.extui %0 : i1 to i32
    %c0_i32_0 = arith.constant 0 : i32
    %2 = arith.cmpi ne, %1, %c0_i32_0 : i32
    scf.if %2 {
      %cst_15 = arith.constant 0.000000e+00 : f32
      %20 = vector.broadcast %cst_15 : f32 to vector<256x128xf32>
      %c0_16 = arith.constant 0 : index
      %c0_17 = arith.constant 0 : index
      %21 = vector.load %arg8[%c0_16, %c0_17] : memref<256x128xf32, #tpu.memory_space<vmem>>, vector<256x128xf32>
      tpu.vector_store %arg8[%c0_16, %c0_17], %20 {strides = array<i32>} : memref<256x128xf32, #tpu.memory_space<vmem>>, vector<256x128xf32>,
    } else {
    }
    %c0 = arith.constant 0 : index
    %c0_1 = arith.constant 0 : index
    %3 = vector.load %arg2[%c0, %c0_1] : memref<256x128xbf16, #tpu.memory_space<vmem>>, vector<256x128xbf16>
    %c0_2 = arith.constant 0 : index
    %c0_3 = arith.constant 0 : index
    %4 = vector.load %arg3[%c0_2, %c0_3] : memref<128x512xbf16, #tpu.memory_space<vmem>>, vector<128x512xbf16>
    %cst = arith.constant dense<0.000000e+00> : vector<256x512xf32>
    %5 = tpu.matmul %3, %4, %cst {dimension_numbers = #tpu.dot_dimension_numbers<[1], [0], [0], [1], [0, 0, 1, 1], [], []>} : vector<256x128xbf16>, vector<128x512xbf16>, vector<256x512xf32> -> vector<256x512xf32>
    %c0_4 = arith.constant 0 : index
    %c0_5 = arith.constant 0 : index
    %6 = vector.load %arg4[%c0_4, %c0_5] : memref<1x512xf32, #tpu.memory_space<vmem>>, vector<1x512xf32>
    %7 = vector.broadcast %6 : vector<1x512xf32> to vector<256x512xf32>
    %8 = arith.addf %5, %7 : vector<256x512xf32>
    %cst_6 = arith.constant 0.000000e+00 : f32
    %9 = vector.broadcast %cst_6 : f32 to vector<256x512xf32>
    %10 = arith.maximumf %8, %9 : vector<256x512xf32>
    %c0_7 = arith.constant 0 : index
    %c0_8 = arith.constant 0 : index
    %11 = vector.load %arg8[%c0_7, %c0_8] : memref<256x128xf32, #tpu.memory_space<vmem>>, vector<256x128xf32>
    %12 = arith.truncf %10 : vector<256x512xf32> to vector<256x512xbf16>
    %c0_9 = arith.constant 0 : index
    %c0_10 = arith.constant 0 : index
    %13 = vector.load %arg5[%c0_9, %c0_10] : memref<512x128xbf16, #tpu.memory_space<vmem>>, vector<512x128xbf16>
    %cst_11 = arith.constant dense<0.000000e+00> : vector<256x128xf32>
    %14 = tpu.matmul %12, %13, %cst_11 {dimension_numbers = #tpu.dot_dimension_numbers<[1], [0], [0], [1], [0, 0, 1, 1], [], []>} : vector<256x512xbf16>, vector<512x128xbf16>, vector<256x128xf32> -> vector<256x128xf32>
    %15 = arith.addf %11, %14 : vector<256x128xf32>
    %c0_12 = arith.constant 0 : index
    %c0_13 = arith.constant 0 : index
    %16 = vector.load %arg8[%c0_12, %c0_13] : memref<256x128xf32, #tpu.memory_space<vmem>>, vector<256x128xf32>
    tpu.vector_store %arg8[%c0_12, %c0_13], %15 {strides = array<i32>} : memref<256x128xf32, #tpu.memory_space<vmem>>, vector<256x128xf32>,
    %c1_i32 = arith.constant 1 : i32
    %17 = arith.cmpi eq, %arg1, %c1_i32 : i32
    %18 = arith.extui %17 : i1 to i32
    %c0_i32_14 = arith.constant 0 : i32
    %19 = arith.cmpi ne, %18, %c0_i32_14 : i32
    scf.if %19 {
      %c0_15 = arith.constant 0 : index
      %c0_16 = arith.constant 0 : index
      %20 = vector.load %arg8[%c0_15, %c0_16] : memref<256x128xf32, #tpu.memory_space<vmem>>, vector<256x128xf32>
      %c0_17 = arith.constant 0 : index
      %c0_18 = arith.constant 0 : index
      %21 = vector.load %arg6[%c0_17, %c0_18] : memref<1x128xf32, #tpu.memory_space<vmem>>, vector<1x128xf32>
      %22 = vector.broadcast %21 : vector<1x128xf32> to vector<256x128xf32>
      %23 = arith.addf %20, %22 : vector<256x128xf32>
      %24 = arith.truncf %23 : vector<256x128xf32> to vector<256x128xbf16>
      %c0_19 = arith.constant 0 : index
      %c0_20 = arith.constant 0 : index
      %25 = vector.load %arg7[%c0_19, %c0_20] : memref<256x128xbf16, #tpu.memory_space<vmem>>, vector<256x128xbf16>
      tpu.vector_store %arg7[%c0_19, %c0_20], %24 {strides = array<i32>} : memref<256x128xbf16, #tpu.memory_space<vmem>>, vector<256x128xbf16>,
    } else {
    }
    return
  }
  func.func @transform_0(%arg0: i32, %arg1: i32) -> (i32, i32) {
    %c0_i32 = arith.constant 0 : i32
    %c0_i32_0 = arith.constant 0 : i32
    return %arg0, %c0_i32 : i32, i32
  }
  func.func @transform_1(%arg0: i32, %arg1: i32) -> (i32, i32) {
    %c0_i32 = arith.constant 0 : i32
    %c0_i32_0 = arith.constant 0 : i32
    return %c0_i32, %arg1 : i32, i32
  }
  func.func @transform_2(%arg0: i32, %arg1: i32) -> (i32, i32) {
    %c0_i32 = arith.constant 0 : i32
    %c0_i32_0 = arith.constant 0 : i32
    return %c0_i32, %arg1 : i32, i32
  }
  func.func @transform_3(%arg0: i32, %arg1: i32) -> (i32, i32) {
    %c0_i32 = arith.constant 0 : i32
    %c0_i32_0 = arith.constant 0 : i32
    return %arg1, %c0_i32 : i32, i32
  }
  func.func @transform_4(%arg0: i32, %arg1: i32) -> (i32, i32) {
    %c0_i32 = arith.constant 0 : i32
    %c0_i32_0 = arith.constant 0 : i32
    %c0_i32_1 = arith.constant 0 : i32
    return %c0_i32, %c0_i32_0 : i32, i32
  }
  func.func @transform_5(%arg0: i32, %arg1: i32) -> (i32, i32) {
    %c0_i32 = arith.constant 0 : i32
    %c0_i32_0 = arith.constant 0 : i32
    return %arg0, %c0_i32 : i32, i32
  }
}

</mosaic_0001>

<llo_original>
// kernel: tpu_custom_call.1
$region0: #{tpu_custom_call.1}
  #allocation0 [shape = 'u32[]', space=smem, size = 0x4, offset = 0x4, fixed_abs, tag = 'smem constant byte address 0x4 - core index']
  #allocation1 [shape = 'u32[144,128]{1,0:T(1,128)}', space=vmem, size = 0x12000, scoped, tag = 'internal scratch']
  #allocation2 [shape = 'f32[256,128]{1,0:T(8,128)}', space=vmem, size = 0x20000, scoped, tag = 'scratch operand']
  %s0 = inlined_call_operand.hbm [shape: bf16[512,128], index: 0, kind: input, shape index: {}]
  %s1 = inlined_call_operand.hbm [shape: bf16[128,1024], index: 1, kind: input, shape index: {}]
  %s2 = inlined_call_operand.hbm [shape: f32[1,1024], index: 2, kind: input, shape index: {}]
  %s3 = inlined_call_operand.hbm [shape: bf16[1024,128], index: 3, kind: input, shape index: {}]
  %s4 = inlined_call_operand.vmem [shape: f32[1,128], index: 4, kind: input, shape index: {}]
  %s5 = inlined_call_operand.hbm [shape: bf16[512,128], index: 5, kind: output, shape index: {}]
  %s6 = sld [smem:[#allocation0]]
  $region77: #{tpu_custom_call.1} parent=0
    _
  %s8 = ssub.s32 1, %s6
  %s9 = scalar_select 0, %s8, %s6
  $region1: #{tpu_custom_call.1} parent=0
    #allocation3 [shape = 'u8[131072]{0}', space=vmem, size = 0x20000, scoped, tag = 'input window, operand 0']
    #allocation4 [shape = 's32[2]{0}', space=sflag, size = 0x8, scoped, tag = 'scoped memory for tpu_custom_call.1']
    #allocation5 [shape = 's32[2]{0}', space=sflag, size = 0x8, scoped, tag = 'scoped memory for tpu_custom_call.1']
    #allocation6 [shape = 'u8[262144]{0}', space=vmem, size = 0x40000, scoped, tag = 'input window, operand 1']
    #allocation7 [shape = 's32[2]{0}', space=sflag, size = 0x8, scoped, tag = 'scoped memory for tpu_custom_call.1']
    #allocation8 [shape = 'u8[4096]{0}', space=vmem, size = 0x1000, scoped, tag = 'input window, operand 2']
    #allocation9 [shape = 'u8[262144]{0}', space=vmem, size = 0x40000, scoped, tag = 'input window, operand 3']
    #allocation10 [shape = 's32[2]{0}', space=sflag, size = 0x8, scoped, tag = 'scoped memory for tpu_custom_call.1']
    #allocation11 [shape = 'u8[131072]{0}', space=vmem, size = 0x20000, scoped, tag = 'output window, operand 0']
    %10 = vsyncpa [#allocation4], 0
    %s11 = scalar_lea.sflag [#allocation4], 1
    %12 = vsyncpa %s11, 0
    %13 = vsyncpa [#allocation7], 0
    %s14 = scalar_lea.sflag [#allocation7], 1
    %15 = vsyncpa %s14, 0
    %16 = vsyncpa [#allocation10], 0
    %s17 = scalar_lea.sflag [#allocation10], 1
    %18 = vsyncpa %s17, 0
    %19 = vsyncpa [#allocation5], 0
    %s20 = scalar_lea.sflag [#allocation5], 1
    %21 = vsyncpa %s20, 0
    loop: start=0, step=1, limit=6
    $region2: #{tpu_custom_call.1} parent=1 // loop_pre_header
      _
    $region3: #{tpu_custom_call.1} parent=1 // loop_header
      %s23 = sphi 0, %s27
      %p24 = scmp.ge.s32.totalorder %s23, 6
      %s30 = sphi 0, %s42
      %s31 = sphi 0, %s38
      %s32 = sphi 0, %s30
      %s33 = sphi 0, %s31
      %s34 = sphi 0, %s32
      %s35 = sphi 0, %s33
      %s45 = sphi 0, %s47
      %s48 = sphi 0, %s45
      %s49 = sphi 0, %s48
      %s65 = sphi 0, %s49
      %s71 = sphi 0, %s73
      %s74 = sphi 0, %s71
      %s75 = sphi 0, %s74
      %s91 = sphi 0, %s75
      %s97 = sphi 0, %s99
      %s100 = sphi 0, %s97
      %s101 = sphi 0, %s100
      %s117 = sphi 0, %s101
      %s123 = sphi 0, %s125
      %s126 = sphi 0, %s123
      %s127 = sphi 0, %s126
      %s143 = sphi 0, %s127
      %s147 = sphi 0, %s147
      %s149 = sphi 0, %s147
      %s150 = sphi 0, %s149
      %s164 = sphi 0, %s150
      %s170 = sphi 0, %s172
      %s173 = sphi 0, %s170
      %s174 = sphi 0, %s173
      %s190 = sphi 0, %s174
    $region4: #{tpu_custom_call.1} parent=1 // loop_header_branch
      %26 = sbr.rel (%p24) target = $region8
    $region5: #{tpu_custom_call.1} parent=1 // loop_body
      %s28 = ssub.s32 %s23, 1
      %s29 = ssub.s32 %s23, 2
      %s36 = sadd.s32 1, %s31
      %p37 = scmp.ge.s32.totalorder %s36, 2
      %s38 = scalar_select %p37, 0, %s36
      %s39 = sadd.s32 1, %s30
      %s40 = scalar_select %p37, %s39, %s30
      %p41 = scmp.ge.s32.totalorder %s40, 2
      %s42 = scalar_select %p41, 0, %s40
      %s43 = ssub.s32 %s30, %s42
      %p44 = scmp.eq.s32.totalorder %s43, 0
      %s46 = sadd.s32 %s45, 1
      %s47 = scalar_select %p44, %s45, %s46
      %p50 = pneg %p44
      %p51 = scmp.eq.s32.totalorder %s23, 3
      %p52 = por %p50, %p51
      %p53 = scmp.ne.s32.totalorder %s45, %s48
      %p54 = scmp.eq.s32.totalorder %s23, 0
      %p55 = por %p53, %p54
      %p56 = scmp.ne.s32.totalorder %s45, %s48
      %p57 = scmp.eq.s32.totalorder %s28, 3
      %p58 = por %p56, %p57
      %p59 = scmp.ne.s32.totalorder %s48, %s49
      %p60 = scmp.eq.s32.totalorder %s28, 0
      %p61 = por %p59, %p60
      %p62 = scmp.ne.s32.totalorder %s48, %s49
      %p63 = scmp.eq.s32.totalorder %s29, 3
      %p64 = por %p62, %p63
      %p66 = scmp.ne.s32.totalorder %s49, %s65
      %p67 = scmp.eq.s32.totalorder %s29, 0
      %p68 = por %p66, %p67
      %s69 = ssub.s32 %s31, %s38
      %p70 = scmp.eq.s32.totalorder %s69, 0
      %s72 = sadd.s32 %s71, 1
      %s73 = scalar_select %p70, %s71, %s72
      %p76 = pneg %p70
      %p77 = scmp.eq.s32.totalorder %s23, 3
      %p78 = por %p76, %p77
      %p79 = scmp.ne.s32.totalorder %s71, %s74
      %p80 = scmp.eq.s32.totalorder %s23, 0
      %p81 = por %p79, %p80
      %p82 = scmp.ne.s32.totalorder %s71, %s74
      %p83 = scmp.eq.s32.totalorder %s28, 3
      %p84 = por %p82, %p83
      %p85 = scmp.ne.s32.totalorder %s74, %s75
      %p86 = scmp.eq.s32.totalorder %s28, 0
      %p87 = por %p85, %p86
      %p88 = scmp.ne.s32.totalorder %s74, %s75
      %p89 = scmp.eq.s32.totalorder %s29, 3
      %p90 = por %p88, %p89
      %p92 = scmp.ne.s32.totalorder %s75, %s91
      %p93 = scmp.eq.s32.totalorder %s29, 0
      %p94 = por %p92, %p93
      %s95 = ssub.s32 %s31, %s38
      %p96 = scmp.eq.s32.totalorder %s95, 0
      %s98 = sadd.s32 %s97, 1
      %s99 = scalar_select %p96, %s97, %s98
      %p102 = pneg %p96
      %p103 = scmp.eq.s32.totalorder %s23, 3
      %p104 = por %p102, %p103
      %p105 = scmp.ne.s32.totalorder %s97, %s100
      %p106 = scmp.eq.s32.totalorder %s23, 0
      %p107 = por %p105, %p106
      %p108 = scmp.ne.s32.totalorder %s97, %s100
      %p109 = scmp.eq.s32.totalorder %s28, 3
      %p110 = por %p108, %p109
      %p111 = scmp.ne.s32.totalorder %s100, %s101
      %p112 = scmp.eq.s32.totalorder %s28, 0
      %p113 = por %p111, %p112
      %p114 = scmp.ne.s32.totalorder %s100, %s101
      %p115 = scmp.eq.s32.totalorder %s29, 3
      %p116 = por %p114, %p115
      %p118 = scmp.ne.s32.totalorder %s101, %s117
      %p119 = scmp.eq.s32.totalorder %s29, 0
      %p120 = por %p118, %p119
      %s121 = ssub.s32 %s31, %s38
      %p122 = scmp.eq.s32.totalorder %s121, 0
      %s124 = sadd.s32 %s123, 1
      %s125 = scalar_select %p122, %s123, %s124
      %p128 = pneg %p122
      %p129 = scmp.eq.s32.totalorder %s23, 3
      %p130 = por %p128, %p129
      %p131 = scmp.ne.s32.totalorder %s123, %s126
      %p132 = scmp.eq.s32.totalorder %s23, 0
      %p133 = por %p131, %p132
      %p134 = scmp.ne.s32.totalorder %s123, %s126
      %p135 = scmp.eq.s32.totalorder %s28, 3
      %p136 = por %p134, %p135
      %p137 = scmp.ne.s32.totalorder %s126, %s127
      %p138 = scmp.eq.s32.totalorder %s28, 0
      %p139 = por %p137, %p138
      %p140 = scmp.ne.s32.totalorder %s126, %s127
      %p141 = scmp.eq.s32.totalorder %s29, 3
      %p142 = por %p140, %p141
      %p144 = scmp.ne.s32.totalorder %s127, %s143
      %p145 = scmp.eq.s32.totalorder %s29, 0
      %p146 = por %p144, %p145
      %s148 = sadd.s32 %s147, 1
      %p151 = scmp.eq.s32.totalorder %s23, 3
      %p152 = scmp.ne.s32.totalorder %s147, %s149
      %p153 = scmp.eq.s32.totalorder %s23, 0
      %p154 = por %p152, %p153
      %p155 = scmp.ne.s32.totalorder %s147, %s149
      %p156 = scmp.eq.s32.totalorder %s28, 3
      %p157 = por %p155, %p156
      %p158 = scmp.ne.s32.totalorder %s149, %s150
      %p159 = scmp.eq.s32.totalorder %s28, 0
      %p160 = por %p158, %p159
      %p161 = scmp.ne.s32.totalorder %s149, %s150
      %p162 = scmp.eq.s32.totalorder %s29, 3
      %p163 = por %p161, %p162
      %p165 = scmp.ne.s32.totalorder %s150, %s164
      %p166 = scmp.eq.s32.totalorder %s29, 0
      %p167 = por %p165, %p166
      %s168 = ssub.s32 %s30, %s42
      %p169 = scmp.eq.s32.totalorder %s168, 0
      %s171 = sadd.s32 %s170, 1
      %s172 = scalar_select %p169, %s170, %s171
      %p175 = pneg %p169
      %p176 = scmp.eq.s32.totalorder %s23, 3
      %p177 = por %p175, %p176
      %p178 = scmp.ne.s32.totalorder %s170, %s173
      %p179 = scmp.eq.s32.totalorder %s23, 0
      %p180 = por %p178, %p179
      %p181 = scmp.ne.s32.totalorder %s170, %s173
      %p182 = scmp.eq.s32.totalorder %s28, 3
      %p183 = por %p181, %p182
      %p184 = scmp.ne.s32.totalorder %s173, %s174
      %p185 = scmp.eq.s32.totalorder %s28, 0
      %p186 = por %p184, %p185
      %p187 = scmp.ne.s32.totalorder %s173, %s174
      %p188 = scmp.eq.s32.totalorder %s29, 3
      %p189 = por %p187, %p188
      %p191 = scmp.ne.s32.totalorder %s174, %s190
      %p192 = scmp.eq.s32.totalorder %s29, 0
      %p193 = por %p191, %p192
      %p194 = scmp.le.s32.totalorder 1, %s23
      %p195 = scmp.lt.s32.totalorder %s23, 5
      %p196 = pnand %p194, %p195
      %p197 = pneg %p196
      // Predicated region
      $region9: #{tpu_custom_call.1} parent=5 // pred_check
        _
      $region10: #{tpu_custom_call.1} parent=5 // pred_check_branch
        %199 = sbr.rel (%p196) target = $region12
      $region11: #{tpu_custom_call.1} parent=5 // pred_region
        %s200 = ssub.s32 %s23, 1
        // Predicated region
        $region13: #{tpu_custom_call.1} parent=11 // pred_check
          %p201 = pneg %p160
        $region14: #{tpu_custom_call.1} parent=11 // pred_check_branch
          %203 = sbr.rel (%p201) target = $region16
        $region15: #{tpu_custom_call.1} parent=11 // pred_region
          _
        $region16: #{tpu_custom_call.1} parent=11 // pred_fallthru
          _
      $region12: #{tpu_custom_call.1} parent=5 // pred_fallthru
        _
      %p204 = scmp.lt.s32.totalorder %s23, 4
      // Predicated region
      $region17: #{tpu_custom_call.1} parent=5 // pred_check
        %p205 = pneg %p204
      $region18: #{tpu_custom_call.1} parent=5 // pred_check_branch
        %207 = sbr.rel (%p205) target = $region20
      $region19: #{tpu_custom_call.1} parent=5 // pred_region
        // Predicated region
        $region21: #{tpu_custom_call.1} parent=19 // pred_check
          %p208 = pneg %p55
        $region22: #{tpu_custom_call.1} parent=19 // pred_check_branch
          %210 = sbr.rel (%p208) target = $region24
        $region23: #{tpu_custom_call.1} parent=19 // pred_region
          %s211 = sand.u32 %s45, 1
          %s212 = scalar_lea.sflag [#allocation4], %s211
          %s213 = sand.u32 %s45, 1
          %s214 = smul.addr %s213, 128
          %s215 = scalar_lea.vmem [#allocation3], %s214
          %s216 = smul.u32 32, %s30
          %s218 = ssub.s32 2048, 2048
          %219 = vsyncadd %s212, %s218
          %s220 = smul.addr %s216, 64
          %s221 = scalar_lea.hbm %s0, %s220
          %s222 = sshll.u32 %s215, 4
          %s223 = int_to_ptr.vmem [resolvable:$true] %s222
          %228 = dma.hbm_to_vmem [thread:$0]  %s221, 2048, %s223, %s212, 64, 64, 4
        $region24: #{tpu_custom_call.1} parent=19 // pred_fallthru
          _
        // Predicated region
        $region25: #{tpu_custom_call.1} parent=19 // pred_check
          %p229 = pneg %p81
        $region26: #{tpu_custom_call.1} parent=19 // pred_check_branch
          %231 = sbr.rel (%p229) target = $region28
        $region27: #{tpu_custom_call.1} parent=19 // pred_region
          %s232 = sand.u32 %s23, 1
          %s233 = scalar_lea.sflag [#allocation7], %s232
          %s234 = sand.u32 %s71, 1
          %s235 = smul.addr %s234, 256
          %s236 = scalar_lea.vmem [#allocation6], %s235
          %s237 = smul.u32 4, %s31
          %s239 = ssub.s32 4096, 4096
          %240 = vsyncadd %s233, %s239
          %s241 = smul.addr %s237, 64
          %s242 = scalar_lea.hbm %s1, %s241
          %s243 = sshll.u32 %s236, 4
          %s244 = int_to_ptr.vmem [resolvable:$true] %s243
          %249 = dma.hbm_to_vmem [thread:$0]  %s242, 4096, %s244, %s233, 512, 256, 16
        $region28: #{tpu_custom_call.1} parent=19 // pred_fallthru
          _
        // Predicated region
        $region29: #{tpu_custom_call.1} parent=19 // pred_check
          %p250 = pneg %p107
        $region30: #{tpu_custom_call.1} parent=19 // pred_check_branch
          %252 = sbr.rel (%p250) target = $region32
        $region31: #{tpu_custom_call.1} parent=19 // pred_region
          %s253 = sand.u32 %s23, 1
          %s254 = scalar_lea.sflag [#allocation7], %s253
          %s255 = sand.u32 %s97, 1
          %s256 = smul.addr %s255, 4
          %s257 = scalar_lea.vmem [#allocation8], %s256
          %s258 = smul.u32 4, %s31
          %s260 = ssub.s32 64, 64
          %261 = vsyncadd %s254, %s260
          %s262 = smul.addr %s258, 16
          %s263 = scalar_lea.hbm %s2, %s262
          %s265 = sshll.u32 %s257, 4
          %s266 = int_to_ptr.vmem [resolvable:$true] %s265
          %268 = dma.hbm_to_vmem [thread:$0]  %s263, 64, %s266, %s254
        $region32: #{tpu_custom_call.1} parent=19 // pred_fallthru
          _
        // Predicated region
        $region33: #{tpu_custom_call.1} parent=19 // pred_check
          %p269 = pneg %p133
        $region34: #{tpu_custom_call.1} parent=19 // pred_check_branch
          %271 = sbr.rel (%p269) target = $region36
        $region35: #{tpu_custom_call.1} parent=19 // pred_region
          %s272 = sand.u32 %s123, 1
          %s273 = scalar_lea.sflag [#allocation10], %s272
          %s274 = sand.u32 %s123, 1
          %s275 = smul.addr %s274, 256
          %s276 = scalar_lea.vmem [#allocation9], %s275
          %s277 = smul.u32 64, %s31
          %s279 = ssub.s32 4096, 4096
          %280 = vsyncadd %s273, %s279
          %s281 = smul.addr %s277, 64
          %s282 = scalar_lea.hbm %s3, %s281
          %s283 = sshll.u32 %s276, 4
          %s284 = int_to_ptr.vmem [resolvable:$true] %s283
          %289 = dma.hbm_to_vmem [thread:$0]  %s282, 4096, %s284, %s273, 64, 64, 4
        $region36: #{tpu_custom_call.1} parent=19 // pred_fallthru
          _
      $region20: #{tpu_custom_call.1} parent=5 // pred_fallthru
        _
      %p290 = scmp.le.s32.totalorder 1, %s23
      %p291 = scmp.lt.s32.totalorder %s23, 5
      %p292 = pnand %p290, %p291
      %p293 = pneg %p292
      // Predicated region
      $region37: #{tpu_custom_call.1} parent=5 // pred_check
        _
      $region38: #{tpu_custom_call.1} parent=5 // pred_check_branch
        %295 = sbr.rel (%p292) target = $region40
      $region39: #{tpu_custom_call.1} parent=5 // pred_region
        %s296 = ssub.s32 %s23, 1
        %s297 = sand.u32 %s48, 1
        %s298 = scalar_lea.sflag [#allocation4], %s297
        %s299 = sand.u32 %s48, 1
        %s300 = smul.addr %s299, 128
        %s301 = scalar_lea.vmem [#allocation3], %s300
        // Predicated region
        $region41: #{tpu_custom_call.1} parent=39 // pred_check
          %p302 = pneg %p61
        $region42: #{tpu_custom_call.1} parent=39 // pred_check_branch
          %304 = sbr.rel (%p302) target = $region44
        $region43: #{tpu_custom_call.1} parent=39 // pred_region
          %305 = dma.done %s298, 2048
        $region44: #{tpu_custom_call.1} parent=39 // pred_fallthru
          _
        %s306 = sand.u32 %s28, 1
        %s307 = scalar_lea.sflag [#allocation7], %s306
        %s308 = sand.u32 %s74, 1
        %s309 = smul.addr %s308, 256
        %s310 = scalar_lea.vmem [#allocation6], %s309
        // Predicated region
        $region45: #{tpu_custom_call.1} parent=39 // pred_check
          %p311 = pneg %p87
        $region46: #{tpu_custom_call.1} parent=39 // pred_check_branch
          %313 = sbr.rel (%p311) target = $region48
        $region47: #{tpu_custom_call.1} parent=39 // pred_region
          %314 = dma.done %s307, 4096
        $region48: #{tpu_custom_call.1} parent=39 // pred_fallthru
          _
        %s315 = sand.u32 %s28, 1
        %s316 = scalar_lea.sflag [#allocation7], %s315
        %s317 = sand.u32 %s100, 1
        %s318 = smul.addr %s317, 4
        %s319 = scalar_lea.vmem [#allocation8], %s318
        // Predicated region
        $region49: #{tpu_custom_call.1} parent=39 // pred_check
          %p320 = pneg %p113
        $region50: #{tpu_custom_call.1} parent=39 // pred_check_branch
          %322 = sbr.rel (%p320) target = $region52
        $region51: #{tpu_custom_call.1} parent=39 // pred_region
          %323 = dma.done %s316, 64
        $region52: #{tpu_custom_call.1} parent=39 // pred_fallthru
          _
        %s324 = sand.u32 %s126, 1
        %s325 = scalar_lea.sflag [#allocation10], %s324
        %s326 = sand.u32 %s126, 1
        %s327 = smul.addr %s326, 256
        %s328 = scalar_lea.vmem [#allocation9], %s327
        // Predicated region
        $region53: #{tpu_custom_call.1} parent=39 // pred_check
          %p329 = pneg %p139
        $region54: #{tpu_custom_call.1} parent=39 // pred_check_branch
          %331 = sbr.rel (%p329) target = $region56
        $region55: #{tpu_custom_call.1} parent=39 // pred_region
          %332 = dma.done %s325, 4096
        $region56: #{tpu_custom_call.1} parent=39 // pred_fallthru
          _
        %s333 = sand.u32 %s48, 1
        %s334 = scalar_lea.sflag [#allocation4], %s333
        %s335 = sand.u32 %s48, 1
        %s336 = smul.addr %s335, 128
        %s337 = scalar_lea.vmem [#allocation3], %s336
        %p338 = pneg %p61
        %p339 = pneg %p58
        %s340 = sand.u32 %s28, 1
        %s341 = scalar_lea.sflag [#allocation7], %s340
        %s342 = sand.u32 %s74, 1
        %s343 = smul.addr %s342, 256
        %s344 = scalar_lea.vmem [#allocation6], %s343
        %p345 = pneg %p87
        %p346 = pneg %p84
        %s347 = sand.u32 %s28, 1
        %s348 = scalar_lea.sflag [#allocation7], %s347
        %s349 = sand.u32 %s100, 1
        %s350 = smul.addr %s349, 4
        %s351 = scalar_lea.vmem [#allocation8], %s350
        %p352 = pneg %p113
        %p353 = pneg %p110
        %s354 = sand.u32 %s126, 1
        %s355 = scalar_lea.sflag [#allocation10], %s354
        %s356 = sand.u32 %s126, 1
        %s357 = smul.addr %s356, 256
        %s358 = scalar_lea.vmem [#allocation9], %s357
        %p359 = pneg %p139
        %p360 = pneg %p136
        %p361 = pneg %p160
        %p362 = pneg %p157
        %p363 = pneg %p186
        %p364 = pneg %p183
        %s365 = sand.u32 %s173, 1
        %s366 = scalar_lea.sflag [#allocation5], %s365
        %s367 = sand.u32 %s173, 1
        %s368 = smul.addr %s367, 128
        %s369 = scalar_lea.vmem [#allocation11], %s368
        %s370 = smul.u32 32, %s32
        %s371 = smul.u32 4, %s33
        %s372 = smul.u32 4, %s33
        %s373 = smul.u32 64, %s33
        %s374 = smul.u32 32, %s32
        %p376 = scmp.eq.s32.totalorder %s33, 0
        // Predicated region
        $region57: #{tpu_custom_call.1} parent=39 // pred_check
          %p377 = pneg %p376
        $region58: #{tpu_custom_call.1} parent=39 // pred_check_branch
          %379 = sbr.rel (%p377) target = $region60
        $region59: #{tpu_custom_call.1} parent=39 // pred_region
          %380 = vst [vmem:[#allocation2] sm:$0xff] 0.0
          %381 = vst [vmem:[#allocation2 + $0x8] sm:$0xff] 0.0
          %382 = vst [vmem:[#allocation2 + $0x10] sm:$0xff] 0.0
          %383 = vst [vmem:[#allocation2 + $0x18] sm:$0xff] 0.0
          %384 = vst [vmem:[#allocation2 + $0x20] sm:$0xff] 0.0
          %385 = vst [vmem:[#allocation2 + $0x28] sm:$0xff] 0.0
          %386 = vst [vmem:[#allocation2 + $0x30] sm:$0xff] 0.0
          %387 = vst [vmem:[#allocation2 + $0x38] sm:$0xff] 0.0
          %388 = vst [vmem:[#allocation2 + $0x40] sm:$0xff] 0.0
          %389 = vst [vmem:[#allocation2 + $0x48] sm:$0xff] 0.0
          %390 = vst [vmem:[#allocation2 + $0x50] sm:$0xff] 0.0
          %391 = vst [vmem:[#allocation2 + $0x58] sm:$0xff] 0.0
          %392 = vst [vmem:[#allocation2 + $0x60] sm:$0xff] 0.0
          %393 = vst [vmem:[#allocation2 + $0x68] sm:$0xff] 0.0
          %394 = vst [vmem:[#allocation2 + $0x70] sm:$0xff] 0.0
          %395 = vst [vmem:[#allocation2 + $0x78] sm:$0xff] 0.0
          %396 = vst [vmem:[#allocation2 + $0x80] sm:$0xff] 0.0
          %397 = vst [vmem:[#allocation2 + $0x88] sm:$0xff] 0.0
          %398 = vst [vmem:[#allocation2 + $0x90] sm:$0xff] 0.0
          %399 = vst [vmem:[#allocation2 + $0x98] sm:$0xff] 0.0
          %400 = vst [vmem:[#allocation2 + $0xa0] sm:$0xff] 0.0
          %401 = vst [vmem:[#allocation2 + $0xa8] sm:$0xff] 0.0
          %402 = vst [vmem:[#allocation2 + $0xb0] sm:$0xff] 0.0
          %403 = vst [vmem:[#allocation2 + $0xb8] sm:$0xff] 0.0
          %404 = vst [vmem:[#allocation2 + $0xc0] sm:$0xff] 0.0
          %405 = vst [vmem:[#allocation2 + $0xc8] sm:$0xff] 0.0
          %406 = vst [vmem:[#allocation2 + $0xd0] sm:$0xff] 0.0
          %407 = vst [vmem:[#allocation2 + $0xd8] sm:$0xff] 0.0
          %408 = vst [vmem:[#allocation2 + $0xe0] sm:$0xff] 0.0
          %409 = vst [vmem:[#allocation2 + $0xe8] sm:$0xff] 0.0
          %410 = vst [vmem:[#allocation2 + $0xf0] sm:$0xff] 0.0
          %411 = vst [vmem:[#allocation2 + $0xf8] sm:$0xff] 0.0
        $region60: #{tpu_custom_call.1} parent=39 // pred_fallthru
          _
        %v412 = vld [vmem:[%s301] sm:$0xf]
        %v413 = vld [vmem:[%s301 + $0x4] sm:$0xf]
        %v414 = vld [vmem:[%s301 + $0x8] sm:$0xf]
        %v415 = vld [vmem:[%s301 + $0xc] sm:$0xf]
        %v416 = vld [vmem:[%s301 + $0x10] sm:$0xf]
        %v417 = vld [vmem:[%s301 + $0x14] sm:$0xf]
        %v418 = vld [vmem:[%s301 + $0x18] sm:$0xf]
        %v419 = vld [vmem:[%s301 + $0x1c] sm:$0xf]
        %v420 = vld [vmem:[%s301 + $0x20] sm:$0xf]
        %v421 = vld [vmem:[%s301 + $0x24] sm:$0xf]
        %v422 = vld [vmem:[%s301 + $0x28] sm:$0xf]
        %v423 = vld [vmem:[%s301 + $0x2c] sm:$0xf]
        %v424 = vld [vmem:[%s301 + $0x30] sm:$0xf]
        %v425 = vld [vmem:[%s301 + $0x34] sm:$0xf]
        %v426 = vld [vmem:[%s301 + $0x38] sm:$0xf]
        %v427 = vld [vmem:[%s301 + $0x3c] sm:$0xf]
        %v428 = vld [vmem:[%s301 + $0x40] sm:$0xf]
        %v429 = vld [vmem:[%s301 + $0x44] sm:$0xf]
        %v430 = vld [vmem:[%s301 + $0x48] sm:$0xf]
        %v431 = vld [vmem:[%s301 + $0x4c] sm:$0xf]
        %v432 = vld [vmem:[%s301 + $0x50] sm:$0xf]
        %v433 = vld [vmem:[%s301 + $0x54] sm:$0xf]
        %v434 = vld [vmem:[%s301 + $0x58] sm:$0xf]
        %v435 = vld [vmem:[%s301 + $0x5c] sm:$0xf]
        %v436 = vld [vmem:[%s301 + $0x60] sm:$0xf]
        %v437 = vld [vmem:[%s301 + $0x64] sm:$0xf]
        %v438 = vld [vmem:[%s301 + $0x68] sm:$0xf]
        %v439 = vld [vmem:[%s301 + $0x6c] sm:$0xf]
        %v440 = vld [vmem:[%s301 + $0x70] sm:$0xf]
        %v441 = vld [vmem:[%s301 + $0x74] sm:$0xf]
        %v442 = vld [vmem:[%s301 + $0x78] sm:$0xf]
        %v443 = vld [vmem:[%s301 + $0x7c] sm:$0xf]
        %v444 = vld [vmem:[%s310] sm:$0xff]
        %v445 = vld [vmem:[%s310 + $0x8] sm:$0xff]
        %v446 = vld [vmem:[%s310 + $0x10] sm:$0xff]
        %v447 = vld [vmem:[%s310 + $0x18] sm:$0xff]
        %v448 = vld [vmem:[%s310 + $0x20] sm:$0xff]
        %v449 = vld [vmem:[%s310 + $0x28] sm:$0xff]
        %v450 = vld [vmem:[%s310 + $0x30] sm:$0xff]
        %v451 = vld [vmem:[%s310 + $0x38] sm:$0xff]
        %v452 = vld [vmem:[%s310 + $0x40] sm:$0xff]
        %v453 = vld [vmem:[%s310 + $0x48] sm:$0xff]
        %v454 = vld [vmem:[%s310 + $0x50] sm:$0xff]
        %v455 = vld [vmem:[%s310 + $0x58] sm:$0xff]
        %v456 = vld [vmem:[%s310 + $0x60] sm:$0xff]
        %v457 = vld [vmem:[%s310 + $0x68] sm:$0xff]
        %v458 = vld [vmem:[%s310 + $0x70] sm:$0xff]
        %v459 = vld [vmem:[%s310 + $0x78] sm:$0xff]
        %v460 = vld [vmem:[%s310 + $0x80] sm:$0xff]
        %v461 = vld [vmem:[%s310 + $0x88] sm:$0xff]
        %v462 = vld [vmem:[%s310 + $0x90] sm:$0xff]
        %v463 = vld [vmem:[%s310 + $0x98] sm:$0xff]
        %v464 = vld [vmem:[%s310 + $0xa0] sm:$0xff]
        %v465 = vld [vmem:[%s310 + $0xa8] sm:$0xff]
        %v466 = vld [vmem:[%s310 + $0xb0] sm:$0xff]
        %v467 = vld [vmem:[%s310 + $0xb8] sm:$0xff]
        %v468 = vld [vmem:[%s310 + $0xc0] sm:$0xff]
        %v469 = vld [vmem:[%s310 + $0xc8] sm:$0xff]
        %v470 = vld [vmem:[%s310 + $0xd0] sm:$0xff]
        %v471 = vld [vmem:[%s310 + $0xd8] sm:$0xff]
        %v472 = vld [vmem:[%s310 + $0xe0] sm:$0xff]
        %v473 = vld [vmem:[%s310 + $0xe8] sm:$0xff]
        %v474 = vld [vmem:[%s310 + $0xf0] sm:$0xff]
        %v475 = vld [vmem:[%s310 + $0xf8] sm:$0xff]
        %v476 = vld [vmem:[%s319] sm:$0xf]
        %v478 = vlaneseq
        %v479 = vshrl.u32 %v478, 7
        %v480 = vsub.s32 0, %v479
        %v481 = vrot.slane %v476, %v480
        %v482 = vlaneseq
        %v483 = vshrl.u32 %v482, 7
        %v484 = vsub.s32 1, %v483
        %v485 = vrot.slane %v476, %v484
        %v486 = vlaneseq
        %v487 = vshrl.u32 %v486, 7
        %v488 = vsub.s32 2, %v487
        %v489 = vrot.slane %v476, %v488
        %v490 = vlaneseq
        %v491 = vshrl.u32 %v490, 7
        %v492 = vsub.s32 3, %v491
        %v493 = vrot.slane %v476, %v492
        %v530 = vunpack.c.l.b16 %v412
        %v531 = vunpack.c.l.b16 %v413
        %v532 = vunpack.c.l.b16 %v414
        %v533 = vunpack.c.l.b16 %v415
        %v534 = vunpack.c.l.b16 %v416
        %v535 = vunpack.c.l.b16 %v417
        %v536 = vunpack.c.l.b16 %v418
        %v537 = vunpack.c.l.b16 %v419
        %v538 = vunpack.c.l.b16 %v420
        %v539 = vunpack.c.l.b16 %v421
        %v540 = vunpack.c.l.b16 %v422
        %v541 = vunpack.c.l.b16 %v423
        %v542 = vunpack.c.l.b16 %v424
        %v543 = vunpack.c.l.b16 %v425
        %v544 = vunpack.c.l.b16 %v426
        %v545 = vunpack.c.l.b16 %v427
        %v546 = vunpack.c.l.b16 %v428
        %v547 = vunpack.c.l.b16 %v429
        %v548 = vunpack.c.l.b16 %v430
        %v549 = vunpack.c.l.b16 %v431
        %v550 = vunpack.c.l.b16 %v432
        %v551 = vunpack.c.l.b16 %v433
        %v552 = vunpack.c.l.b16 %v434
        %v553 = vunpack.c.l.b16 %v435
        %v554 = vunpack.c.l.b16 %v436
        %v555 = vunpack.c.l.b16 %v437
        %v556 = vunpack.c.l.b16 %v438
        %v557 = vunpack.c.l.b16 %v439
        %v558 = vunpack.c.l.b16 %v440
        %v559 = vunpack.c.l.b16 %v441
        %v560 = vunpack.c.l.b16 %v442
        %v561 = vunpack.c.l.b16 %v443
        %v562 = vpack.c.b16 %v531, %v530
        %v563 = vpack.c.b16 %v533, %v532
        %v564 = vpack.c.b16 %v535, %v534
        %v565 = vpack.c.b16 %v537, %v536
        %v566 = vpack.c.b16 %v539, %v538
        %v567 = vpack.c.b16 %v541, %v540
        %v568 = vpack.c.b16 %v543, %v542
        %v569 = vpack.c.b16 %v545, %v544
        %v570 = vpack.c.b16 %v547, %v546
        %v571 = vpack.c.b16 %v549, %v548
        %v572 = vpack.c.b16 %v551, %v550
        %v573 = vpack.c.b16 %v553, %v552
        %v574 = vpack.c.b16 %v555, %v554
        %v575 = vpack.c.b16 %v557, %v556
        %v576 = vpack.c.b16 %v559, %v558
        %v577 = vpack.c.b16 %v561, %v560
        %v626 = vunpack.c.l.b16 %v444
        %v627 = vunpack.c.h.b16 %v444
        %v628 = vunpack.c.l.b16 %v445
        %v629 = vunpack.c.h.b16 %v445
        %v630 = vunpack.c.l.b16 %v446
        %v631 = vunpack.c.h.b16 %v446
        %v632 = vunpack.c.l.b16 %v447
        %v633 = vunpack.c.h.b16 %v447
        %v634 = vunpack.c.l.b16 %v448
        %v635 = vunpack.c.h.b16 %v448
        %v636 = vunpack.c.l.b16 %v449
        %v637 = vunpack.c.h.b16 %v449
        %v638 = vunpack.c.l.b16 %v450
        %v639 = vunpack.c.h.b16 %v450
        %v640 = vunpack.c.l.b16 %v451
        %v641 = vunpack.c.h.b16 %v451
        %v642 = vunpack.c.l.b16 %v452
        %v643 = vunpack.c.h.b16 %v452
        %v644 = vunpack.c.l.b16 %v453
        %v645 = vunpack.c.h.b16 %v453
        %v646 = vunpack.c.l.b16 %v454
        %v647 = vunpack.c.h.b16 %v454
        %v648 = vunpack.c.l.b16 %v455
        %v649 = vunpack.c.h.b16 %v455
        %v650 = vunpack.c.l.b16 %v456
        %v651 = vunpack.c.h.b16 %v456
        %v652 = vunpack.c.l.b16 %v457
        %v653 = vunpack.c.h.b16 %v457
        %v654 = vunpack.c.l.b16 %v458
        %v655 = vunpack.c.h.b16 %v458
        %v656 = vunpack.c.l.b16 %v459
        %v657 = vunpack.c.h.b16 %v459
        %v658 = vunpack.c.l.b16 %v460
        %v659 = vunpack.c.h.b16 %v460
        %v660 = vunpack.c.l.b16 %v461
        %v661 = vunpack.c.h.b16 %v461
        %v662 = vunpack.c.l.b16 %v462
        %v663 = vunpack.c.h.b16 %v462
        %v664 = vunpack.c.l.b16 %v463
        %v665 = vunpack.c.h.b16 %v463
        %v666 = vunpack.c.l.b16 %v464
        %v667 = vunpack.c.h.b16 %v464
        %v668 = vunpack.c.l.b16 %v465
        %v669 = vunpack.c.h.b16 %v465
        %v670 = vunpack.c.l.b16 %v466
        %v671 = vunpack.c.h.b16 %v466
        %v672 = vunpack.c.l.b16 %v467
        %v673 = vunpack.c.h.b16 %v467
        %v674 = vunpack.c.l.b16 %v468
        %v675 = vunpack.c.h.b16 %v468
        %v676 = vunpack.c.l.b16 %v469
        %v677 = vunpack.c.h.b16 %v469
        %v678 = vunpack.c.l.b16 %v470
        %v679 = vunpack.c.h.b16 %v470
        %v680 = vunpack.c.l.b16 %v471
        %v681 = vunpack.c.h.b16 %v471
        %v682 = vunpack.c.l.b16 %v472
        %v683 = vunpack.c.h.b16 %v472
        %v684 = vunpack.c.l.b16 %v473
        %v685 = vunpack.c.h.b16 %v473
        %v686 = vunpack.c.l.b16 %v474
        %v687 = vunpack.c.h.b16 %v474
        %v688 = vunpack.c.l.b16 %v475
        %v689 = vunpack.c.h.b16 %v475
        %v690 = vpack.c.b16 %v630, %v626
        %v691 = vpack.c.b16 %v631, %v627
        %v692 = vpack.c.b16 %v632, %v628
        %v693 = vpack.c.b16 %v633, %v629
        %v694 = vpack.c.b16 %v638, %v634
        %v695 = vpack.c.b16 %v639, %v635
        %v696 = vpack.c.b16 %v640, %v636
        %v697 = vpack.c.b16 %v641, %v637
        %v698 = vpack.c.b16 %v646, %v642
        %v699 = vpack.c.b16 %v647, %v643
        %v700 = vpack.c.b16 %v648, %v644
        %v701 = vpack.c.b16 %v649, %v645
        %v702 = vpack.c.b16 %v654, %v650
        %v703 = vpack.c.b16 %v655, %v651
        %v704 = vpack.c.b16 %v656, %v652
        %v705 = vpack.c.b16 %v657, %v653
        %v706 = vpack.c.b16 %v662, %v658
        %v707 = vpack.c.b16 %v663, %v659
        %v708 = vpack.c.b16 %v664, %v660
        %v709 = vpack.c.b16 %v665, %v661
        %v710 = vpack.c.b16 %v670, %v666
        %v711 = vpack.c.b16 %v671, %v667
        %v712 = vpack.c.b16 %v672, %v668
        %v713 = vpack.c.b16 %v673, %v669
        %v714 = vpack.c.b16 %v678, %v674
        %v715 = vpack.c.b16 %v679, %v675
        %v716 = vpack.c.b16 %v680, %v676
        %v717 = vpack.c.b16 %v681, %v677
        %v718 = vpack.c.b16 %v686, %v682
        %v719 = vpack.c.b16 %v687, %v683
        %v720 = vpack.c.b16 %v688, %v684
        %v721 = vpack.c.b16 %v689, %v685
        %754 = vmatprep.subr.bf16.mxu0 %v719
        %755 = vmatpush1.bf16.msra.mxu0 %v718
        %756 = vmatprep.subr.bf16.mxu0 %v715
        %757 = vmatpush1.bf16.msra.mxu0 %v714
        %758 = vmatprep.subr.bf16.mxu0 %v711
        %759 = vmatpush1.bf16.msra.mxu0 %v710
        %760 = vmatprep.subr.bf16.mxu0 %v707
        %761 = vmatpush1.bf16.msra.mxu0 %v706
        %762 = vmatprep.subr.bf16.mxu0 %v703
        %763 = vmatpush1.bf16.msra.mxu0 %v702
        %764 = vmatprep.subr.bf16.mxu0 %v699
        %765 = vmatpush1.bf16.msra.mxu0 %v698
        %766 = vmatprep.subr.bf16.mxu0 %v695
        %767 = vmatpush1.bf16.msra.mxu0 %v694
        %768 = vmatprep.subr.bf16.mxu0 %v691
        %769 = vmatpush1.bf16.msra.mxu0 %v690
        %770 = vmatprep.subr.bf16.mxu0 0
        %771 = vmatpush2.bf16.msra.mxu0 0
        %772 = vmatprep.subr.bf16.mxu0 0
        %773 = vmatpush2.bf16.msra.mxu0 0
        %774 = vmatprep.subr.bf16.mxu0 0
        %775 = vmatpush2.bf16.msra.mxu0 0
        %776 = vmatprep.subr.bf16.mxu0 0
        %777 = vmatpush2.bf16.msra.mxu0 0
        %778 = vmatprep.subr.bf16.mxu0 0
        %779 = vmatpush2.bf16.msra.mxu0 0
        %780 = vmatprep.subr.bf16.mxu0 0
        %781 = vmatpush2.bf16.msra.mxu0 0
        %782 = vmatprep.subr.bf16.mxu0 0
        %783 = vmatpush2.bf16.msra.mxu0 0
        %784 = vmatprep.subr.bf16.mxu0 0
        %785 = vmatpush2.bf16.msra.mxu0 0
        %786 = vmatprep.mubr.bf16.mxu0 0
        %787 = vmatmul.mubr.bf16.gmra.mxu0 %v562
        %v788 = vpop.f32.mrf.mxu0
        %v789 = vadd.f32 %v481, %v788
        %v790 = vpop.f32.mrf.mxu0
        %v791 = vadd.f32 %v485, %v790
        %v792 = vpop.f32.mrf.mxu0
        %v793 = vadd.f32 %v481, %v792
        %v794 = vpop.f32.mrf.mxu0
        %v795 = vadd.f32 %v485, %v794
        %796 = vmatprep.mubr.bf16.mxu0 0
        %797 = vmatmul.mubr.bf16.gmra.mxu0 %v563
        %v798 = vpop.f32.mrf.mxu0
        %v799 = vadd.f32 %v481, %v798
        %v800 = vpop.f32.mrf.mxu0
        %v801 = vadd.f32 %v485, %v800
        %v802 = vpop.f32.mrf.mxu0
        %v803 = vadd.f32 %v481, %v802
        %v804 = vpop.f32.mrf.mxu0
        %v805 = vadd.f32 %v485, %v804
        %806 = vmatprep.mubr.bf16.mxu0 0
        %807 = vmatmul.mubr.bf16.gmra.mxu0 %v564
        %v808 = vpop.f32.mrf.mxu0
        %v809 = vadd.f32 %v481, %v808
        %v810 = vpop.f32.mrf.mxu0
        %v811 = vadd.f32 %v485, %v810
        %v812 = vpop.f32.mrf.mxu0
        %v813 = vadd.f32 %v481, %v812
        %v814 = vpop.f32.mrf.mxu0
        %v815 = vadd.f32 %v485, %v814
        %816 = vmatprep.mubr.bf16.mxu0 0
        %817 = vmatmul.mubr.bf16.gmra.mxu0 %v565
        %v818 = vpop.f32.mrf.mxu0
        %v819 = vadd.f32 %v481, %v818
        %v820 = vpop.f32.mrf.mxu0
        %v821 = vadd.f32 %v485, %v820
        %v822 = vpop.f32.mrf.mxu0
        %v823 = vadd.f32 %v481, %v822
        %v824 = vpop.f32.mrf.mxu0
        %v825 = vadd.f32 %v485, %v824
        %826 = vmatprep.mubr.bf16.mxu0 0
        %827 = vmatmul.mubr.bf16.gmra.mxu0 %v566
        %v828 = vpop.f32.mrf.mxu0
        %v829 = vadd.f32 %v481, %v828
        %v830 = vpop.f32.mrf.mxu0
        %v831 = vadd.f32 %v485, %v830
        %v832 = vpop.f32.mrf.mxu0
        %v833 = vadd.f32 %v481, %v832
        %v834 = vpop.f32.mrf.mxu0
        %v835 = vadd.f32 %v485, %v834
        %836 = vmatprep.mubr.bf16.mxu0 0
        %837 = vmatmul.mubr.bf16.gmra.mxu0 %v567
        %v838 = vpop.f32.mrf.mxu0
        %v839 = vadd.f32 %v481, %v838
        %v840 = vpop.f32.mrf.mxu0
        %v841 = vadd.f32 %v485, %v840
        %v842 = vpop.f32.mrf.mxu0
        %v843 = vadd.f32 %v481, %v842
        %v844 = vpop.f32.mrf.mxu0
        %v845 = vadd.f32 %v485, %v844
        %846 = vmatprep.mubr.bf16.mxu0 0
        %847 = vmatmul.mubr.bf16.gmra.mxu0 %v568
        %v848 = vpop.f32.mrf.mxu0
        %v849 = vadd.f32 %v481, %v848
        %v850 = vpop.f32.mrf.mxu0
        %v851 = vadd.f32 %v485, %v850
        %v852 = vpop.f32.mrf.mxu0
        %v853 = vadd.f32 %v481, %v852
        %v854 = vpop.f32.mrf.mxu0
        %v855 = vadd.f32 %v485, %v854
        %856 = vmatprep.mubr.bf16.mxu0 0
        %857 = vmatmul.mubr.bf16.gmra.mxu0 %v569
        %v858 = vpop.f32.mrf.mxu0
        %v859 = vadd.f32 %v481, %v858
        %v860 = vpop.f32.mrf.mxu0
        %v861 = vadd.f32 %v485, %v860
        %v862 = vpop.f32.mrf.mxu0
        %v863 = vadd.f32 %v481, %v862
        %v864 = vpop.f32.mrf.mxu0
        %v865 = vadd.f32 %v485, %v864
        %866 = vmatprep.mubr.bf16.mxu0 0
        %867 = vmatmul.mubr.bf16.gmra.mxu0 %v570
        %v868 = vpop.f32.mrf.mxu0
        %v869 = vadd.f32 %v481, %v868
        %v870 = vpop.f32.mrf.mxu0
        %v871 = vadd.f32 %v485, %v870
        %v872 = vpop.f32.mrf.mxu0
        %v873 = vadd.f32 %v481, %v872
        %v874 = vpop.f32.mrf.mxu0
        %v875 = vadd.f32 %v485, %v874
        %876 = vmatprep.mubr.bf16.mxu0 0
        %877 = vmatmul.mubr.bf16.gmra.mxu0 %v571
        %v878 = vpop.f32.mrf.mxu0
        %v879 = vadd.f32 %v481, %v878
        %v880 = vpop.f32.mrf.mxu0
        %v881 = vadd.f32 %v485, %v880
        %v882 = vpop.f32.mrf.mxu0
        %v883 = vadd.f32 %v481, %v882
        %v884 = vpop.f32.mrf.mxu0
        %v885 = vadd.f32 %v485, %v884
        %886 = vmatprep.mubr.bf16.mxu0 0
        %887 = vmatmul.mubr.bf16.gmra.mxu0 %v572
        %v888 = vpop.f32.mrf.mxu0
        %v889 = vadd.f32 %v481, %v888
        %v890 = vpop.f32.mrf.mxu0
        %v891 = vadd.f32 %v485, %v890
        %v892 = vpop.f32.mrf.mxu0
        %v893 = vadd.f32 %v481, %v892
        %v894 = vpop.f32.mrf.mxu0
        %v895 = vadd.f32 %v485, %v894
        %896 = vmatprep.mubr.bf16.mxu0 0
        %897 = vmatmul.mubr.bf16.gmra.mxu0 %v573
        %v898 = vpop.f32.mrf.mxu0
        %v899 = vadd.f32 %v481, %v898
        %v900 = vpop.f32.mrf.mxu0
        %v901 = vadd.f32 %v485, %v900
        %v902 = vpop.f32.mrf.mxu0
        %v903 = vadd.f32 %v481, %v902
        %v904 = vpop.f32.mrf.mxu0
        %v905 = vadd.f32 %v485, %v904
        %906 = vmatprep.mubr.bf16.mxu0 0
        %907 = vmatmul.mubr.bf16.gmra.mxu0 %v574
        %v908 = vpop.f32.mrf.mxu0
        %v909 = vadd.f32 %v481, %v908
        %v910 = vpop.f32.mrf.mxu0
        %v911 = vadd.f32 %v485, %v910
        %v912 = vpop.f32.mrf.mxu0
        %v913 = vadd.f32 %v481, %v912
        %v914 = vpop.f32.mrf.mxu0
        %v915 = vadd.f32 %v485, %v914
        %916 = vmatprep.mubr.bf16.mxu0 0
        %917 = vmatmul.mubr.bf16.gmra.mxu0 %v575
        %v918 = vpop.f32.mrf.mxu0
        %v919 = vadd.f32 %v481, %v918
        %v920 = vpop.f32.mrf.mxu0
        %v921 = vadd.f32 %v485, %v920
        %v922 = vpop.f32.mrf.mxu0
        %v923 = vadd.f32 %v481, %v922
        %v924 = vpop.f32.mrf.mxu0
        %v925 = vadd.f32 %v485, %v924
        %926 = vmatprep.mubr.bf16.mxu0 0
        %927 = vmatmul.mubr.bf16.gmra.mxu0 %v576
        %v928 = vpop.f32.mrf.mxu0
        %v929 = vadd.f32 %v481, %v928
        %v930 = vpop.f32.mrf.mxu0
        %v931 = vadd.f32 %v485, %v930
        %v932 = vpop.f32.mrf.mxu0
        %v933 = vadd.f32 %v481, %v932
        %v934 = vpop.f32.mrf.mxu0
        %v935 = vadd.f32 %v485, %v934
        %936 = vmatprep.mubr.bf16.mxu0 0
        %937 = vmatmul.mubr.bf16.gmra.mxu0 %v577
        %v938 = vpop.f32.mrf.mxu0
        %v939 = vadd.f32 %v481, %v938
        %v940 = vpop.f32.mrf.mxu0
        %v941 = vadd.f32 %v485, %v940
        %v942 = vpop.f32.mrf.mxu0
        %v943 = vadd.f32 %v481, %v942
        %v944 = vpop.f32.mrf.mxu0
        %v945 = vadd.f32 %v485, %v944
        %946 = vdwg.mxu0
        %947 = vmatprep.subr.bf16.mxu0 %v721
        %948 = vmatpush1.bf16.msra.mxu0 %v720
        %949 = vmatprep.subr.bf16.mxu0 %v717
        %950 = vmatpush1.bf16.msra.mxu0 %v716
        %951 = vmatprep.subr.bf16.mxu0 %v713
        %952 = vmatpush1.bf16.msra.mxu0 %v712
        %953 = vmatprep.subr.bf16.mxu0 %v709
        %954 = vmatpush1.bf16.msra.mxu0 %v708
        %955 = vmatprep.subr.bf16.mxu0 %v705
        %956 = vmatpush1.bf16.msra.mxu0 %v704
        %957 = vmatprep.subr.bf16.mxu0 %v701
        %958 = vmatpush1.bf16.msra.mxu0 %v700
        %959 = vmatprep.subr.bf16.mxu0 %v697
        %960 = vmatpush1.bf16.msra.mxu0 %v696
        %961 = vmatprep.subr.bf16.mxu0 %v693
        %962 = vmatpush1.bf16.msra.mxu0 %v692
        %963 = vmatprep.subr.bf16.mxu0 0
        %964 = vmatpush2.bf16.msra.mxu0 0
        %965 = vmatprep.subr.bf16.mxu0 0
        %966 = vmatpush2.bf16.msra.mxu0 0
        %967 = vmatprep.subr.bf16.mxu0 0
        %968 = vmatpush2.bf16.msra.mxu0 0
        %969 = vmatprep.subr.bf16.mxu0 0
        %970 = vmatpush2.bf16.msra.mxu0 0
        %971 = vmatprep.subr.bf16.mxu0 0
        %972 = vmatpush2.bf16.msra.mxu0 0
        %973 = vmatprep.subr.bf16.mxu0 0
        %974 = vmatpush2.bf16.msra.mxu0 0
        %975 = vmatprep.subr.bf16.mxu0 0
        %976 = vmatpush2.bf16.msra.mxu0 0
        %977 = vmatprep.subr.bf16.mxu0 0
        %978 = vmatpush2.bf16.msra.mxu0 0
        %979 = vmatprep.mubr.bf16.mxu0 0
        %980 = vmatmul.mubr.bf16.gmra.mxu0 %v562
        %v981 = vpop.f32.mrf.mxu0
        %v982 = vadd.f32 %v489, %v981
        %v983 = vpop.f32.mrf.mxu0
        %v984 = vadd.f32 %v493, %v983
        %v985 = vpop.f32.mrf.mxu0
        %v986 = vadd.f32 %v489, %v985
        %v987 = vpop.f32.mrf.mxu0
        %v988 = vadd.f32 %v493, %v987
        %989 = vmatprep.mubr.bf16.mxu0 0
        %990 = vmatmul.mubr.bf16.gmra.mxu0 %v563
        %v991 = vpop.f32.mrf.mxu0
        %v992 = vadd.f32 %v489, %v991
        %v993 = vpop.f32.mrf.mxu0
        %v994 = vadd.f32 %v493, %v993
        %v995 = vpop.f32.mrf.mxu0
        %v996 = vadd.f32 %v489, %v995
        %v997 = vpop.f32.mrf.mxu0
        %v998 = vadd.f32 %v493, %v997
        %999 = vmatprep.mubr.bf16.mxu0 0
        %1000 = vmatmul.mubr.bf16.gmra.mxu0 %v564
        %v1001 = vpop.f32.mrf.mxu0
        %v1002 = vadd.f32 %v489, %v1001
        %v1003 = vpop.f32.mrf.mxu0
        %v1004 = vadd.f32 %v493, %v1003
        %v1005 = vpop.f32.mrf.mxu0
        %v1006 = vadd.f32 %v489, %v1005
        %v1007 = vpop.f32.mrf.mxu0
        %v1008 = vadd.f32 %v493, %v1007
        %1009 = vmatprep.mubr.bf16.mxu0 0
        %1010 = vmatmul.mubr.bf16.gmra.mxu0 %v565
        %v1011 = vpop.f32.mrf.mxu0
        %v1012 = vadd.f32 %v489, %v1011
        %v1013 = vpop.f32.mrf.mxu0
        %v1014 = vadd.f32 %v493, %v1013
        %v1015 = vpop.f32.mrf.mxu0
        %v1016 = vadd.f32 %v489, %v1015
        %v1017 = vpop.f32.mrf.mxu0
        %v1018 = vadd.f32 %v493, %v1017
        %1019 = vmatprep.mubr.bf16.mxu0 0
        %1020 = vmatmul.mubr.bf16.gmra.mxu0 %v566
        %v1021 = vpop.f32.mrf.mxu0
        %v1022 = vadd.f32 %v489, %v1021
        %v1023 = vpop.f32.mrf.mxu0
        %v1024 = vadd.f32 %v493, %v1023
        %v1025 = vpop.f32.mrf.mxu0
        %v1026 = vadd.f32 %v489, %v1025
        %v1027 = vpop.f32.mrf.mxu0
        %v1028 = vadd.f32 %v493, %v1027
        %1029 = vmatprep.mubr.bf16.mxu0 0
        %1030 = vmatmul.mubr.bf16.gmra.mxu0 %v567
        %v1031 = vpop.f32.mrf.mxu0
        %v1032 = vadd.f32 %v489, %v1031
        %v1033 = vpop.f32.mrf.mxu0
        %v1034 = vadd.f32 %v493, %v1033
        %v1035 = vpop.f32.mrf.mxu0
        %v1036 = vadd.f32 %v489, %v1035
        %v1037 = vpop.f32.mrf.mxu0
        %v1038 = vadd.f32 %v493, %v1037
        %1039 = vmatprep.mubr.bf16.mxu0 0
        %1040 = vmatmul.mubr.bf16.gmra.mxu0 %v568
        %v1041 = vpop.f32.mrf.mxu0
        %v1042 = vadd.f32 %v489, %v1041
        %v1043 = vpop.f32.mrf.mxu0
        %v1044 = vadd.f32 %v493, %v1043
        %v1045 = vpop.f32.mrf.mxu0
        %v1046 = vadd.f32 %v489, %v1045
        %v1047 = vpop.f32.mrf.mxu0
        %v1048 = vadd.f32 %v493, %v1047
        %1049 = vmatprep.mubr.bf16.mxu0 0
        %1050 = vmatmul.mubr.bf16.gmra.mxu0 %v569
        %v1051 = vpop.f32.mrf.mxu0
        %v1052 = vadd.f32 %v489, %v1051
        %v1053 = vpop.f32.mrf.mxu0
        %v1054 = vadd.f32 %v493, %v1053
        %v1055 = vpop.f32.mrf.mxu0
        %v1056 = vadd.f32 %v489, %v1055
        %v1057 = vpop.f32.mrf.mxu0
        %v1058 = vadd.f32 %v493, %v1057
        %1059 = vmatprep.mubr.bf16.mxu0 0
        %1060 = vmatmul.mubr.bf16.gmra.mxu0 %v570
        %v1061 = vpop.f32.mrf.mxu0
        %v1062 = vadd.f32 %v489, %v1061
        %v1063 = vpop.f32.mrf.mxu0
        %v1064 = vadd.f32 %v493, %v1063
        %v1065 = vpop.f32.mrf.mxu0
        %v1066 = vadd.f32 %v489, %v1065
        %v1067 = vpop.f32.mrf.mxu0
        %v1068 = vadd.f32 %v493, %v1067
        %1069 = vmatprep.mubr.bf16.mxu0 0
        %1070 = vmatmul.mubr.bf16.gmra.mxu0 %v571
        %v1071 = vpop.f32.mrf.mxu0
        %v1072 = vadd.f32 %v489, %v1071
        %v1073 = vpop.f32.mrf.mxu0
        %v1074 = vadd.f32 %v493, %v1073
        %v1075 = vpop.f32.mrf.mxu0
        %v1076 = vadd.f32 %v489, %v1075
        %v1077 = vpop.f32.mrf.mxu0
        %v1078 = vadd.f32 %v493, %v1077
        %1079 = vmatprep.mubr.bf16.mxu0 0
        %1080 = vmatmul.mubr.bf16.gmra.mxu0 %v572
        %v1081 = vpop.f32.mrf.mxu0
        %v1082 = vadd.f32 %v489, %v1081
        %v1083 = vpop.f32.mrf.mxu0
        %v1084 = vadd.f32 %v493, %v1083
        %v1085 = vpop.f32.mrf.mxu0
        %v1086 = vadd.f32 %v489, %v1085
        %v1087 = vpop.f32.mrf.mxu0
        %v1088 = vadd.f32 %v493, %v1087
        %1089 = vmatprep.mubr.bf16.mxu0 0
        %1090 = vmatmul.mubr.bf16.gmra.mxu0 %v573
        %v1091 = vpop.f32.mrf.mxu0
        %v1092 = vadd.f32 %v489, %v1091
        %v1093 = vpop.f32.mrf.mxu0
        %v1094 = vadd.f32 %v493, %v1093
        %v1095 = vpop.f32.mrf.mxu0
        %v1096 = vadd.f32 %v489, %v1095
        %v1097 = vpop.f32.mrf.mxu0
        %v1098 = vadd.f32 %v493, %v1097
        %1099 = vmatprep.mubr.bf16.mxu0 0
        %1100 = vmatmul.mubr.bf16.gmra.mxu0 %v574
        %v1101 = vpop.f32.mrf.mxu0
        %v1102 = vadd.f32 %v489, %v1101
        %v1103 = vpop.f32.mrf.mxu0
        %v1104 = vadd.f32 %v493, %v1103
        %v1105 = vpop.f32.mrf.mxu0
        %v1106 = vadd.f32 %v489, %v1105
        %v1107 = vpop.f32.mrf.mxu0
        %v1108 = vadd.f32 %v493, %v1107
        %1109 = vmatprep.mubr.bf16.mxu0 0
        %1110 = vmatmul.mubr.bf16.gmra.mxu0 %v575
        %v1111 = vpop.f32.mrf.mxu0
        %v1112 = vadd.f32 %v489, %v1111
        %v1113 = vpop.f32.mrf.mxu0
        %v1114 = vadd.f32 %v493, %v1113
        %v1115 = vpop.f32.mrf.mxu0
        %v1116 = vadd.f32 %v489, %v1115
        %v1117 = vpop.f32.mrf.mxu0
        %v1118 = vadd.f32 %v493, %v1117
        %1119 = vmatprep.mubr.bf16.mxu0 0
        %1120 = vmatmul.mubr.bf16.gmra.mxu0 %v576
        %v1121 = vpop.f32.mrf.mxu0
        %v1122 = vadd.f32 %v489, %v1121
        %v1123 = vpop.f32.mrf.mxu0
        %v1124 = vadd.f32 %v493, %v1123
        %v1125 = vpop.f32.mrf.mxu0
        %v1126 = vadd.f32 %v489, %v1125
        %v1127 = vpop.f32.mrf.mxu0
        %v1128 = vadd.f32 %v493, %v1127
        %1129 = vmatprep.mubr.bf16.mxu0 0
        %1130 = vmatmul.mubr.bf16.gmra.mxu0 %v577
        %v1131 = vpop.f32.mrf.mxu0
        %v1132 = vadd.f32 %v489, %v1131
        %v1133 = vpop.f32.mrf.mxu0
        %v1134 = vadd.f32 %v493, %v1133
        %v1135 = vpop.f32.mrf.mxu0
        %v1136 = vadd.f32 %v489, %v1135
        %v1137 = vpop.f32.mrf.mxu0
        %v1138 = vadd.f32 %v493, %v1137
        %1139 = vdwg.mxu0
        %v1140 = vmax.f32 %v789, 0.0
        %v1141 = vmax.f32 %v791, 0.0
        %v1142 = vmax.f32 %v982, 0.0
        %v1143 = vmax.f32 %v984, 0.0
        %v1144 = vmax.f32 %v793, 0.0
        %v1145 = vmax.f32 %v795, 0.0
        %v1146 = vmax.f32 %v986, 0.0
        %v1147 = vmax.f32 %v988, 0.0
        %v1148 = vmax.f32 %v799, 0.0
        %v1149 = vmax.f32 %v801, 0.0
        %v1150 = vmax.f32 %v992, 0.0
        %v1151 = vmax.f32 %v994, 0.0
        %v1152 = vmax.f32 %v803, 0.0
        %v1153 = vmax.f32 %v805, 0.0
        %v1154 = vmax.f32 %v996, 0.0
        %v1155 = vmax.f32 %v998, 0.0
        %v1156 = vmax.f32 %v809, 0.0
        %v1157 = vmax.f32 %v811, 0.0
        %v1158 = vmax.f32 %v1002, 0.0
        %v1159 = vmax.f32 %v1004, 0.0
        %v1160 = vmax.f32 %v813, 0.0
        %v1161 = vmax.f32 %v815, 0.0
        %v1162 = vmax.f32 %v1006, 0.0
        %v1163 = vmax.f32 %v1008, 0.0
        %v1164 = vmax.f32 %v819, 0.0
        %v1165 = vmax.f32 %v821, 0.0
        %v1166 = vmax.f32 %v1012, 0.0
        %v1167 = vmax.f32 %v1014, 0.0
        %v1168 = vmax.f32 %v823, 0.0
        %v1169 = vmax.f32 %v825, 0.0
        %v1170 = vmax.f32 %v1016, 0.0
        %v1171 = vmax.f32 %v1018, 0.0
        %v1172 = vmax.f32 %v829, 0.0
        %v1173 = vmax.f32 %v831, 0.0
        %v1174 = vmax.f32 %v1022, 0.0
        %v1175 = vmax.f32 %v1024, 0.0
        %v1176 = vmax.f32 %v833, 0.0
        %v1177 = vmax.f32 %v835, 0.0
        %v1178 = vmax.f32 %v1026, 0.0
        %v1179 = vmax.f32 %v1028, 0.0
        %v1180 = vmax.f32 %v839, 0.0
        %v1181 = vmax.f32 %v841, 0.0
        %v1182 = vmax.f32 %v1032, 0.0
        %v1183 = vmax.f32 %v1034, 0.0
        %v1184 = vmax.f32 %v843, 0.0
        %v1185 = vmax.f32 %v845, 0.0
        %v1186 = vmax.f32 %v1036, 0.0
        %v1187 = vmax.f32 %v1038, 0.0
        %v1188 = vmax.f32 %v849, 0.0
        %v1189 = vmax.f32 %v851, 0.0
        %v1190 = vmax.f32 %v1042, 0.0
        %v1191 = vmax.f32 %v1044, 0.0
        %v1192 = vmax.f32 %v853, 0.0
        %v1193 = vmax.f32 %v855, 0.0
        %v1194 = vmax.f32 %v1046, 0.0
        %v1195 = vmax.f32 %v1048, 0.0
        %v1196 = vmax.f32 %v859, 0.0
        %v1197 = vmax.f32 %v861, 0.0
        %v1198 = vmax.f32 %v1052, 0.0
        %v1199 = vmax.f32 %v1054, 0.0
        %v1200 = vmax.f32 %v863, 0.0
        %v1201 = vmax.f32 %v865, 0.0
        %v1202 = vmax.f32 %v1056, 0.0
        %v1203 = vmax.f32 %v1058, 0.0
        %v1204 = vmax.f32 %v869, 0.0
        %v1205 = vmax.f32 %v871, 0.0
        %v1206 = vmax.f32 %v1062, 0.0
        %v1207 = vmax.f32 %v1064, 0.0
        %v1208 = vmax.f32 %v873, 0.0
        %v1209 = vmax.f32 %v875, 0.0
        %v1210 = vmax.f32 %v1066, 0.0
        %v1211 = vmax.f32 %v1068, 0.0
        %v1212 = vmax.f32 %v879, 0.0
        %v1213 = vmax.f32 %v881, 0.0
        %v1214 = vmax.f32 %v1072, 0.0
        %v1215 = vmax.f32 %v1074, 0.0
        %v1216 = vmax.f32 %v883, 0.0
        %v1217 = vmax.f32 %v885, 0.0
        %v1218 = vmax.f32 %v1076, 0.0
        %v1219 = vmax.f32 %v1078, 0.0
        %v1220 = vmax.f32 %v889, 0.0
        %v1221 = vmax.f32 %v891, 0.0
        %v1222 = vmax.f32 %v1082, 0.0
        %v1223 = vmax.f32 %v1084, 0.0
        %v1224 = vmax.f32 %v893, 0.0
        %v1225 = vmax.f32 %v895, 0.0
        %v1226 = vmax.f32 %v1086, 0.0
        %v1227 = vmax.f32 %v1088, 0.0
        %v1228 = vmax.f32 %v899, 0.0
        %v1229 = vmax.f32 %v901, 0.0
        %v1230 = vmax.f32 %v1092, 0.0
        %v1231 = vmax.f32 %v1094, 0.0
        %v1232 = vmax.f32 %v903, 0.0
        %v1233 = vmax.f32 %v905, 0.0
        %v1234 = vmax.f32 %v1096, 0.0
        %v1235 = vmax.f32 %v1098, 0.0
        %v1236 = vmax.f32 %v909, 0.0
        %v1237 = vmax.f32 %v911, 0.0
        %v1238 = vmax.f32 %v1102, 0.0
        %v1239 = vmax.f32 %v1104, 0.0
        %v1240 = vmax.f32 %v913, 0.0
        %v1241 = vmax.f32 %v915, 0.0
        %v1242 = vmax.f32 %v1106, 0.0
        %v1243 = vmax.f32 %v1108, 0.0
        %v1244 = vmax.f32 %v919, 0.0
        %v1245 = vmax.f32 %v921, 0.0
        %v1246 = vmax.f32 %v1112, 0.0
        %v1247 = vmax.f32 %v1114, 0.0
        %v1248 = vmax.f32 %v923, 0.0
        %v1249 = vmax.f32 %v925, 0.0
        %v1250 = vmax.f32 %v1116, 0.0
        %v1251 = vmax.f32 %v1118, 0.0
        %v1252 = vmax.f32 %v929, 0.0
        %v1253 = vmax.f32 %v931, 0.0
        %v1254 = vmax.f32 %v1122, 0.0
        %v1255 = vmax.f32 %v1124, 0.0
        %v1256 = vmax.f32 %v933, 0.0
        %v1257 = vmax.f32 %v935, 0.0
        %v1258 = vmax.f32 %v1126, 0.0
        %v1259 = vmax.f32 %v1128, 0.0
        %v1260 = vmax.f32 %v939, 0.0
        %v1261 = vmax.f32 %v941, 0.0
        %v1262 = vmax.f32 %v1132, 0.0
        %v1263 = vmax.f32 %v1134, 0.0
        %v1264 = vmax.f32 %v943, 0.0
        %v1265 = vmax.f32 %v945, 0.0
        %v1266 = vmax.f32 %v1136, 0.0
        %v1267 = vmax.f32 %v1138, 0.0
        %v1268 = vld [vmem:[#allocation2] sm:$0xff]
        %v1269 = vld [vmem:[#allocation2 + $0x8] sm:$0xff]
        %v1270 = vld [vmem:[#allocation2 + $0x10] sm:$0xff]
        %v1271 = vld [vmem:[#allocation2 + $0x18] sm:$0xff]
        %v1272 = vld [vmem:[#allocation2 + $0x20] sm:$0xff]
        %v1273 = vld [vmem:[#allocation2 + $0x28] sm:$0xff]
        %v1274 = vld [vmem:[#allocation2 + $0x30] sm:$0xff]
        %v1275 = vld [vmem:[#allocation2 + $0x38] sm:$0xff]
        %v1276 = vld [vmem:[#allocation2 + $0x40] sm:$0xff]
        %v1277 = vld [vmem:[#allocation2 + $0x48] sm:$0xff]
        %v1278 = vld [vmem:[#allocation2 + $0x50] sm:$0xff]
        %v1279 = vld [vmem:[#allocation2 + $0x58] sm:$0xff]
        %v1280 = vld [vmem:[#allocation2 + $0x60] sm:$0xff]
        %v1281 = vld [vmem:[#allocation2 + $0x68] sm:$0xff]
        %v1282 = vld [vmem:[#allocation2 + $0x70] sm:$0xff]
        %v1283 = vld [vmem:[#allocation2 + $0x78] sm:$0xff]
        %v1284 = vld [vmem:[#allocation2 + $0x80] sm:$0xff]
        %v1285 = vld [vmem:[#allocation2 + $0x88] sm:$0xff]
        %v1286 = vld [vmem:[#allocation2 + $0x90] sm:$0xff]
        %v1287 = vld [vmem:[#allocation2 + $0x98] sm:$0xff]
        %v1288 = vld [vmem:[#allocation2 + $0xa0] sm:$0xff]
        %v1289 = vld [vmem:[#allocation2 + $0xa8] sm:$0xff]
        %v1290 = vld [vmem:[#allocation2 + $0xb0] sm:$0xff]
        %v1291 = vld [vmem:[#allocation2 + $0xb8] sm:$0xff]
        %v1292 = vld [vmem:[#allocation2 + $0xc0] sm:$0xff]
        %v1293 = vld [vmem:[#allocation2 + $0xc8] sm:$0xff]
        %v1294 = vld [vmem:[#allocation2 + $0xd0] sm:$0xff]
        %v1295 = vld [vmem:[#allocation2 + $0xd8] sm:$0xff]
        %v1296 = vld [vmem:[#allocation2 + $0xe0] sm:$0xff]
        %v1297 = vld [vmem:[#allocation2 + $0xe8] sm:$0xff]
        %v1298 = vld [vmem:[#allocation2 + $0xf0] sm:$0xff]
        %v1299 = vld [vmem:[#allocation2 + $0xf8] sm:$0xff]
        %v1300 = vpack.c.bf16 %v1144, %v1140
        %v1301 = vpack.c.bf16 %v1145, %v1141
        %v1302 = vpack.c.bf16 %v1146, %v1142
        %v1303 = vpack.c.bf16 %v1147, %v1143
        %v1304 = vpack.c.bf16 %v1152, %v1148
        %v1305 = vpack.c.bf16 %v1153, %v1149
        %v1306 = vpack.c.bf16 %v1154, %v1150
        %v1307 = vpack.c.bf16 %v1155, %v1151
        %v1308 = vpack.c.bf16 %v1160, %v1156
        %v1309 = vpack.c.bf16 %v1161, %v1157
        %v1310 = vpack.c.bf16 %v1162, %v1158
        %v1311 = vpack.c.bf16 %v1163, %v1159
        %v1312 = vpack.c.bf16 %v1168, %v1164
        %v1313 = vpack.c.bf16 %v1169, %v1165
        %v1314 = vpack.c.bf16 %v1170, %v1166
        %v1315 = vpack.c.bf16 %v1171, %v1167
        %v1316 = vpack.c.bf16 %v1176, %v1172
        %v1317 = vpack.c.bf16 %v1177, %v1173
        %v1318 = vpack.c.bf16 %v1178, %v1174
        %v1319 = vpack.c.bf16 %v1179, %v1175
        %v1320 = vpack.c.bf16 %v1184, %v1180
        %v1321 = vpack.c.bf16 %v1185, %v1181
        %v1322 = vpack.c.bf16 %v1186, %v1182
        %v1323 = vpack.c.bf16 %v1187, %v1183
        %v1324 = vpack.c.bf16 %v1192, %v1188
        %v1325 = vpack.c.bf16 %v1193, %v1189
        %v1326 = vpack.c.bf16 %v1194, %v1190
        %v1327 = vpack.c.bf16 %v1195, %v1191
        %v1328 = vpack.c.bf16 %v1200, %v1196
        %v1329 = vpack.c.bf16 %v1201, %v1197
        %v1330 = vpack.c.bf16 %v1202, %v1198
        %v1331 = vpack.c.bf16 %v1203, %v1199
        %v1332 = vpack.c.bf16 %v1208, %v1204
        %v1333 = vpack.c.bf16 %v1209, %v1205
        %v1334 = vpack.c.bf16 %v1210, %v1206
        %v1335 = vpack.c.bf16 %v1211, %v1207
        %v1336 = vpack.c.bf16 %v1216, %v1212
        %v1337 = vpack.c.bf16 %v1217, %v1213
        %v1338 = vpack.c.bf16 %v1218, %v1214
        %v1339 = vpack.c.bf16 %v1219, %v1215
        %v1340 = vpack.c.bf16 %v1224, %v1220
        %v1341 = vpack.c.bf16 %v1225, %v1221
        %v1342 = vpack.c.bf16 %v1226, %v1222
        %v1343 = vpack.c.bf16 %v1227, %v1223
        %v1344 = vpack.c.bf16 %v1232, %v1228
        %v1345 = vpack.c.bf16 %v1233, %v1229
        %v1346 = vpack.c.bf16 %v1234, %v1230
        %v1347 = vpack.c.bf16 %v1235, %v1231
        %v1348 = vpack.c.bf16 %v1240, %v1236
        %v1349 = vpack.c.bf16 %v1241, %v1237
        %v1350 = vpack.c.bf16 %v1242, %v1238
        %v1351 = vpack.c.bf16 %v1243, %v1239
        %v1352 = vpack.c.bf16 %v1248, %v1244
        %v1353 = vpack.c.bf16 %v1249, %v1245
        %v1354 = vpack.c.bf16 %v1250, %v1246
        %v1355 = vpack.c.bf16 %v1251, %v1247
        %v1356 = vpack.c.bf16 %v1256, %v1252
        %v1357 = vpack.c.bf16 %v1257, %v1253
        %v1358 = vpack.c.bf16 %v1258, %v1254
        %v1359 = vpack.c.bf16 %v1259, %v1255
        %v1360 = vpack.c.bf16 %v1264, %v1260
        %v1361 = vpack.c.bf16 %v1265, %v1261
        %v1362 = vpack.c.bf16 %v1266, %v1262
        %v1363 = vpack.c.bf16 %v1267, %v1263
        %v1364 = vld [vmem:[%s328] sm:$0xf]
        %v1365 = vld [vmem:[%s328 + $0x4] sm:$0xf]
        %v1366 = vld [vmem:[%s328 + $0x8] sm:$0xf]
        %v1367 = vld [vmem:[%s328 + $0xc] sm:$0xf]
        %v1368 = vld [vmem:[%s328 + $0x10] sm:$0xf]
        %v1369 = vld [vmem:[%s328 + $0x14] sm:$0xf]
        %v1370 = vld [vmem:[%s328 + $0x18] sm:$0xf]
        %v1371 = vld [vmem:[%s328 + $0x1c] sm:$0xf]
        %v1372 = vld [vmem:[%s328 + $0x20] sm:$0xf]
        %v1373 = vld [vmem:[%s328 + $0x24] sm:$0xf]
        %v1374 = vld [vmem:[%s328 + $0x28] sm:$0xf]
        %v1375 = vld [vmem:[%s328 + $0x2c] sm:$0xf]
        %v1376 = vld [vmem:[%s328 + $0x30] sm:$0xf]
        %v1377 = vld [vmem:[%s328 + $0x34] sm:$0xf]
        %v1378 = vld [vmem:[%s328 + $0x38] sm:$0xf]
        %v1379 = vld [vmem:[%s328 + $0x3c] sm:$0xf]
        %v1380 = vld [vmem:[%s328 + $0x40] sm:$0xf]
        %v1381 = vld [vmem:[%s328 + $0x44] sm:$0xf]
        %v1382 = vld [vmem:[%s328 + $0x48] sm:$0xf]
        %v1383 = vld [vmem:[%s328 + $0x4c] sm:$0xf]
        %v1384 = vld [vmem:[%s328 + $0x50] sm:$0xf]
        %v1385 = vld [vmem:[%s328 + $0x54] sm:$0xf]
        %v1386 = vld [vmem:[%s328 + $0x58] sm:$0xf]
        %v1387 = vld [vmem:[%s328 + $0x5c] sm:$0xf]
        %v1388 = vld [vmem:[%s328 + $0x60] sm:$0xf]
        %v1389 = vld [vmem:[%s328 + $0x64] sm:$0xf]
        %v1390 = vld [vmem:[%s328 + $0x68] sm:$0xf]
        %v1391 = vld [vmem:[%s328 + $0x6c] sm:$0xf]
        %v1392 = vld [vmem:[%s328 + $0x70] sm:$0xf]
        %v1393 = vld [vmem:[%s328 + $0x74] sm:$0xf]
        %v1394 = vld [vmem:[%s328 + $0x78] sm:$0xf]
        %v1395 = vld [vmem:[%s328 + $0x7c] sm:$0xf]
        %v1396 = vld [vmem:[%s328 + $0x80] sm:$0xf]
        %v1397 = vld [vmem:[%s328 + $0x84] sm:$0xf]
        %v1398 = vld [vmem:[%s328 + $0x88] sm:$0xf]
        %v1399 = vld [vmem:[%s328 + $0x8c] sm:$0xf]
        %v1400 = vld [vmem:[%s328 + $0x90] sm:$0xf]
        %v1401 = vld [vmem:[%s328 + $0x94] sm:$0xf]
        %v1402 = vld [vmem:[%s328 + $0x98] sm:$0xf]
        %v1403 = vld [vmem:[%s328 + $0x9c] sm:$0xf]
        %v1404 = vld [vmem:[%s328 + $0xa0] sm:$0xf]
        %v1405 = vld [vmem:[%s328 + $0xa4] sm:$0xf]
        %v1406 = vld [vmem:[%s328 + $0xa8] sm:$0xf]
        %v1407 = vld [vmem:[%s328 + $0xac] sm:$0xf]
        %v1408 = vld [vmem:[%s328 + $0xb0] sm:$0xf]
        %v1409 = vld [vmem:[%s328 + $0xb4] sm:$0xf]
        %v1410 = vld [vmem:[%s328 + $0xb8] sm:$0xf]
        %v1411 = vld [vmem:[%s328 + $0xbc] sm:$0xf]
        %v1412 = vld [vmem:[%s328 + $0xc0] sm:$0xf]
        %v1413 = vld [vmem:[%s328 + $0xc4] sm:$0xf]
        %v1414 = vld [vmem:[%s328 + $0xc8] sm:$0xf]
        %v1415 = vld [vmem:[%s328 + $0xcc] sm:$0xf]
        %v1416 = vld [vmem:[%s328 + $0xd0] sm:$0xf]
        %v1417 = vld [vmem:[%s328 + $0xd4] sm:$0xf]
        %v1418 = vld [vmem:[%s328 + $0xd8] sm:$0xf]
        %v1419 = vld [vmem:[%s328 + $0xdc] sm:$0xf]
        %v1420 = vld [vmem:[%s328 + $0xe0] sm:$0xf]
        %v1421 = vld [vmem:[%s328 + $0xe4] sm:$0xf]
        %v1422 = vld [vmem:[%s328 + $0xe8] sm:$0xf]
        %v1423 = vld [vmem:[%s328 + $0xec] sm:$0xf]
        %v1424 = vld [vmem:[%s328 + $0xf0] sm:$0xf]
        %v1425 = vld [vmem:[%s328 + $0xf4] sm:$0xf]
        %v1426 = vld [vmem:[%s328 + $0xf8] sm:$0xf]
        %v1427 = vld [vmem:[%s328 + $0xfc] sm:$0xf]
        %v1492 = vunpack.c.l.b16 %v1364
        %v1493 = vunpack.c.l.b16 %v1365
        %v1494 = vunpack.c.l.b16 %v1366
        %v1495 = vunpack.c.l.b16 %v1367
        %v1496 = vunpack.c.l.b16 %v1368
        %v1497 = vunpack.c.l.b16 %v1369
        %v1498 = vunpack.c.l.b16 %v1370
        %v1499 = vunpack.c.l.b16 %v1371
        %v1500 = vunpack.c.l.b16 %v1372
        %v1501 = vunpack.c.l.b16 %v1373
        %v1502 = vunpack.c.l.b16 %v1374
        %v1503 = vunpack.c.l.b16 %v1375
        %v1504 = vunpack.c.l.b16 %v1376
        %v1505 = vunpack.c.l.b16 %v1377
        %v1506 = vunpack.c.l.b16 %v1378
        %v1507 = vunpack.c.l.b16 %v1379
        %v1508 = vunpack.c.l.b16 %v1380
        %v1509 = vunpack.c.l.b16 %v1381
        %v1510 = vunpack.c.l.b16 %v1382
        %v1511 = vunpack.c.l.b16 %v1383
        %v1512 = vunpack.c.l.b16 %v1384
        %v1513 = vunpack.c.l.b16 %v1385
        %v1514 = vunpack.c.l.b16 %v1386
        %v1515 = vunpack.c.l.b16 %v1387
        %v1516 = vunpack.c.l.b16 %v1388
        %v1517 = vunpack.c.l.b16 %v1389
        %v1518 = vunpack.c.l.b16 %v1390
        %v1519 = vunpack.c.l.b16 %v1391
        %v1520 = vunpack.c.l.b16 %v1392
        %v1521 = vunpack.c.l.b16 %v1393
        %v1522 = vunpack.c.l.b16 %v1394
        %v1523 = vunpack.c.l.b16 %v1395
        %v1524 = vunpack.c.l.b16 %v1396
        %v1525 = vunpack.c.l.b16 %v1397
        %v1526 = vunpack.c.l.b16 %v1398
        %v1527 = vunpack.c.l.b16 %v1399
        %v1528 = vunpack.c.l.b16 %v1400
        %v1529 = vunpack.c.l.b16 %v1401
        %v1530 = vunpack.c.l.b16 %v1402
        %v1531 = vunpack.c.l.b16 %v1403
        %v1532 = vunpack.c.l.b16 %v1404
        %v1533 = vunpack.c.l.b16 %v1405
        %v1534 = vunpack.c.l.b16 %v1406
        %v1535 = vunpack.c.l.b16 %v1407
        %v1536 = vunpack.c.l.b16 %v1408
        %v1537 = vunpack.c.l.b16 %v1409
        %v1538 = vunpack.c.l.b16 %v1410
        %v1539 = vunpack.c.l.b16 %v1411
        %v1540 = vunpack.c.l.b16 %v1412
        %v1541 = vunpack.c.l.b16 %v1413
        %v1542 = vunpack.c.l.b16 %v1414
        %v1543 = vunpack.c.l.b16 %v1415
        %v1544 = vunpack.c.l.b16 %v1416
        %v1545 = vunpack.c.l.b16 %v1417
        %v1546 = vunpack.c.l.b16 %v1418
        %v1547 = vunpack.c.l.b16 %v1419
        %v1548 = vunpack.c.l.b16 %v1420
        %v1549 = vunpack.c.l.b16 %v1421
        %v1550 = vunpack.c.l.b16 %v1422
        %v1551 = vunpack.c.l.b16 %v1423
        %v1552 = vunpack.c.l.b16 %v1424
        %v1553 = vunpack.c.l.b16 %v1425
        %v1554 = vunpack.c.l.b16 %v1426
        %v1555 = vunpack.c.l.b16 %v1427
        %v1556 = vpack.c.b16 %v1493, %v1492
        %v1557 = vpack.c.b16 %v1495, %v1494
        %v1558 = vpack.c.b16 %v1497, %v1496
        %v1559 = vpack.c.b16 %v1499, %v1498
        %v1560 = vpack.c.b16 %v1501, %v1500
        %v1561 = vpack.c.b16 %v1503, %v1502
        %v1562 = vpack.c.b16 %v1505, %v1504
        %v1563 = vpack.c.b16 %v1507, %v1506
        %v1564 = vpack.c.b16 %v1509, %v1508
        %v1565 = vpack.c.b16 %v1511, %v1510
        %v1566 = vpack.c.b16 %v1513, %v1512
        %v1567 = vpack.c.b16 %v1515, %v1514
        %v1568 = vpack.c.b16 %v1517, %v1516
        %v1569 = vpack.c.b16 %v1519, %v1518
        %v1570 = vpack.c.b16 %v1521, %v1520
        %v1571 = vpack.c.b16 %v1523, %v1522
        %v1572 = vpack.c.b16 %v1525, %v1524
        %v1573 = vpack.c.b16 %v1527, %v1526
        %v1574 = vpack.c.b16 %v1529, %v1528
        %v1575 = vpack.c.b16 %v1531, %v1530
        %v1576 = vpack.c.b16 %v1533, %v1532
        %v1577 = vpack.c.b16 %v1535, %v1534
        %v1578 = vpack.c.b16 %v1537, %v1536
        %v1579 = vpack.c.b16 %v1539, %v1538
        %v1580 = vpack.c.b16 %v1541, %v1540
        %v1581 = vpack.c.b16 %v1543, %v1542
        %v1582 = vpack.c.b16 %v1545, %v1544
        %v1583 = vpack.c.b16 %v1547, %v1546
        %v1584 = vpack.c.b16 %v1549, %v1548
        %v1585 = vpack.c.b16 %v1551, %v1550
        %v1586 = vpack.c.b16 %v1553, %v1552
        %v1587 = vpack.c.b16 %v1555, %v1554
        %1620 = vmatprep.subr.bf16.mxu0 0
        %1621 = vmatpush1.bf16.msra.mxu0 %v1563
        %1622 = vmatprep.subr.bf16.mxu0 0
        %1623 = vmatpush1.bf16.msra.mxu0 %v1562
        %1624 = vmatprep.subr.bf16.mxu0 0
        %1625 = vmatpush1.bf16.msra.mxu0 %v1561
        %1626 = vmatprep.subr.bf16.mxu0 0
        %1627 = vmatpush1.bf16.msra.mxu0 %v1560
        %1628 = vmatprep.subr.bf16.mxu0 0
        %1629 = vmatpush1.bf16.msra.mxu0 %v1559
        %1630 = vmatprep.subr.bf16.mxu0 0
        %1631 = vmatpush1.bf16.msra.mxu0 %v1558
        %1632 = vmatprep.subr.bf16.mxu0 0
        %1633 = vmatpush1.bf16.msra.mxu0 %v1557
        %1634 = vmatprep.subr.bf16.mxu0 0
        %1635 = vmatpush1.bf16.msra.mxu0 %v1556
        %1636 = vmatprep.subr.bf16.mxu0 0
        %1637 = vmatpush2.bf16.msra.mxu0 %v1571
        %1638 = vmatprep.subr.bf16.mxu0 0
        %1639 = vmatpush2.bf16.msra.mxu0 %v1570
        %1640 = vmatprep.subr.bf16.mxu0 0
        %1641 = vmatpush2.bf16.msra.mxu0 %v1569
        %1642 = vmatprep.subr.bf16.mxu0 0
        %1643 = vmatpush2.bf16.msra.mxu0 %v1568
        %1644 = vmatprep.subr.bf16.mxu0 0
        %1645 = vmatpush2.bf16.msra.mxu0 %v1567
        %1646 = vmatprep.subr.bf16.mxu0 0
        %1647 = vmatpush2.bf16.msra.mxu0 %v1566
        %1648 = vmatprep.subr.bf16.mxu0 0
        %1649 = vmatpush2.bf16.msra.mxu0 %v1565
        %1650 = vmatprep.subr.bf16.mxu0 0
        %1651 = vmatpush2.bf16.msra.mxu0 %v1564
        %1652 = vmatprep.mubr.bf16.mxu0 %v1301
        %1653 = vmatmul.mubr.bf16.gmra.mxu0 %v1300
        %v1654 = vpop.f32.mrf.mxu0
        %v1655 = vadd.f32 0.0, %v1654
        %v1656 = vpop.f32.mrf.mxu0
        %v1657 = vpop.f32.mrf.mxu0
        %v1658 = vadd.f32 0.0, %v1657
        %v1659 = vpop.f32.mrf.mxu0
        %1660 = vmatprep.mubr.bf16.mxu0 %v1305
        %1661 = vmatmul.mubr.bf16.gmra.mxu0 %v1304
        %v1662 = vpop.f32.mrf.mxu0
        %v1663 = vadd.f32 0.0, %v1662
        %v1664 = vpop.f32.mrf.mxu0
        %v1665 = vpop.f32.mrf.mxu0
        %v1666 = vadd.f32 0.0, %v1665
        %v1667 = vpop.f32.mrf.mxu0
        %1668 = vmatprep.mubr.bf16.mxu0 %v1309
        %1669 = vmatmul.mubr.bf16.gmra.mxu0 %v1308
        %v1670 = vpop.f32.mrf.mxu0
        %v1671 = vadd.f32 0.0, %v1670
        %v1672 = vpop.f32.mrf.mxu0
        %v1673 = vpop.f32.mrf.mxu0
        %v1674 = vadd.f32 0.0, %v1673
        %v1675 = vpop.f32.mrf.mxu0
        %1676 = vmatprep.mubr.bf16.mxu0 %v1313
        %1677 = vmatmul.mubr.bf16.gmra.mxu0 %v1312
        %v1678 = vpop.f32.mrf.mxu0
        %v1679 = vadd.f32 0.0, %v1678
        %v1680 = vpop.f32.mrf.mxu0
        %v1681 = vpop.f32.mrf.mxu0
        %v1682 = vadd.f32 0.0, %v1681
        %v1683 = vpop.f32.mrf.mxu0
        %1684 = vmatprep.mubr.bf16.mxu0 %v1317
        %1685 = vmatmul.mubr.bf16.gmra.mxu0 %v1316
        %v1686 = vpop.f32.mrf.mxu0
        %v1687 = vadd.f32 0.0, %v1686
        %v1688 = vpop.f32.mrf.mxu0
        %v1689 = vpop.f32.mrf.mxu0
        %v1690 = vadd.f32 0.0, %v1689
        %v1691 = vpop.f32.mrf.mxu0
        %1692 = vmatprep.mubr.bf16.mxu0 %v1321
        %1693 = vmatmul.mubr.bf16.gmra.mxu0 %v1320
        %v1694 = vpop.f32.mrf.mxu0
        %v1695 = vadd.f32 0.0, %v1694
        %v1696 = vpop.f32.mrf.mxu0
        %v1697 = vpop.f32.mrf.mxu0
        %v1698 = vadd.f32 0.0, %v1697
        %v1699 = vpop.f32.mrf.mxu0
        %1700 = vmatprep.mubr.bf16.mxu0 %v1325
        %1701 = vmatmul.mubr.bf16.gmra.mxu0 %v1324
        %v1702 = vpop.f32.mrf.mxu0
        %v1703 = vadd.f32 0.0, %v1702
        %v1704 = vpop.f32.mrf.mxu0
        %v1705 = vpop.f32.mrf.mxu0
        %v1706 = vadd.f32 0.0, %v1705
        %v1707 = vpop.f32.mrf.mxu0
        %1708 = vmatprep.mubr.bf16.mxu0 %v1329
        %1709 = vmatmul.mubr.bf16.gmra.mxu0 %v1328
        %v1710 = vpop.f32.mrf.mxu0
        %v1711 = vadd.f32 0.0, %v1710
        %v1712 = vpop.f32.mrf.mxu0
        %v1713 = vpop.f32.mrf.mxu0
        %v1714 = vadd.f32 0.0, %v1713
        %v1715 = vpop.f32.mrf.mxu0
        %1716 = vmatprep.mubr.bf16.mxu0 %v1333
        %1717 = vmatmul.mubr.bf16.gmra.mxu0 %v1332
        %v1718 = vpop.f32.mrf.mxu0
        %v1719 = vadd.f32 0.0, %v1718
        %v1720 = vpop.f32.mrf.mxu0
        %v1721 = vpop.f32.mrf.mxu0
        %v1722 = vadd.f32 0.0, %v1721
        %v1723 = vpop.f32.mrf.mxu0
        %1724 = vmatprep.mubr.bf16.mxu0 %v1337
        %1725 = vmatmul.mubr.bf16.gmra.mxu0 %v1336
        %v1726 = vpop.f32.mrf.mxu0
        %v1727 = vadd.f32 0.0, %v1726
        %v1728 = vpop.f32.mrf.mxu0
        %v1729 = vpop.f32.mrf.mxu0
        %v1730 = vadd.f32 0.0, %v1729
        %v1731 = vpop.f32.mrf.mxu0
        %1732 = vmatprep.mubr.bf16.mxu0 %v1341
        %1733 = vmatmul.mubr.bf16.gmra.mxu0 %v1340
        %v1734 = vpop.f32.mrf.mxu0
        %v1735 = vadd.f32 0.0, %v1734
        %v1736 = vpop.f32.mrf.mxu0
        %v1737 = vpop.f32.mrf.mxu0
        %v1738 = vadd.f32 0.0, %v1737
        %v1739 = vpop.f32.mrf.mxu0
        %1740 = vmatprep.mubr.bf16.mxu0 %v1345
        %1741 = vmatmul.mubr.bf16.gmra.mxu0 %v1344
        %v1742 = vpop.f32.mrf.mxu0
        %v1743 = vadd.f32 0.0, %v1742
        %v1744 = vpop.f32.mrf.mxu0
        %v1745 = vpop.f32.mrf.mxu0
        %v1746 = vadd.f32 0.0, %v1745
        %v1747 = vpop.f32.mrf.mxu0
        %1748 = vmatprep.mubr.bf16.mxu0 %v1349
        %1749 = vmatmul.mubr.bf16.gmra.mxu0 %v1348
        %v1750 = vpop.f32.mrf.mxu0
        %v1751 = vadd.f32 0.0, %v1750
        %v1752 = vpop.f32.mrf.mxu0
        %v1753 = vpop.f32.mrf.mxu0
        %v1754 = vadd.f32 0.0, %v1753
        %v1755 = vpop.f32.mrf.mxu0
        %1756 = vmatprep.mubr.bf16.mxu0 %v1353
        %1757 = vmatmul.mubr.bf16.gmra.mxu0 %v1352
        %v1758 = vpop.f32.mrf.mxu0
        %v1759 = vadd.f32 0.0, %v1758
        %v1760 = vpop.f32.mrf.mxu0
        %v1761 = vpop.f32.mrf.mxu0
        %v1762 = vadd.f32 0.0, %v1761
        %v1763 = vpop.f32.mrf.mxu0
        %1764 = vmatprep.mubr.bf16.mxu0 %v1357
        %1765 = vmatmul.mubr.bf16.gmra.mxu0 %v1356
        %v1766 = vpop.f32.mrf.mxu0
        %v1767 = vadd.f32 0.0, %v1766
        %v1768 = vpop.f32.mrf.mxu0
        %v1769 = vpop.f32.mrf.mxu0
        %v1770 = vadd.f32 0.0, %v1769
        %v1771 = vpop.f32.mrf.mxu0
        %1772 = vmatprep.mubr.bf16.mxu0 %v1361
        %1773 = vmatmul.mubr.bf16.gmra.mxu0 %v1360
        %v1774 = vpop.f32.mrf.mxu0
        %v1775 = vadd.f32 0.0, %v1774
        %v1776 = vpop.f32.mrf.mxu0
        %v1777 = vpop.f32.mrf.mxu0
        %v1778 = vadd.f32 0.0, %v1777
        %v1779 = vpop.f32.mrf.mxu0
        %1780 = vdwg.mxu0
        %1781 = vmatprep.subr.bf16.mxu0 0
        %1782 = vmatpush1.bf16.msra.mxu0 %v1579
        %1783 = vmatprep.subr.bf16.mxu0 0
        %1784 = vmatpush1.bf16.msra.mxu0 %v1578
        %1785 = vmatprep.subr.bf16.mxu0 0
        %1786 = vmatpush1.bf16.msra.mxu0 %v1577
        %1787 = vmatprep.subr.bf16.mxu0 0
        %1788 = vmatpush1.bf16.msra.mxu0 %v1576
        %1789 = vmatprep.subr.bf16.mxu0 0
        %1790 = vmatpush1.bf16.msra.mxu0 %v1575
        %1791 = vmatprep.subr.bf16.mxu0 0
        %1792 = vmatpush1.bf16.msra.mxu0 %v1574
        %1793 = vmatprep.subr.bf16.mxu0 0
        %1794 = vmatpush1.bf16.msra.mxu0 %v1573
        %1795 = vmatprep.subr.bf16.mxu0 0
        %1796 = vmatpush1.bf16.msra.mxu0 %v1572
        %1797 = vmatprep.subr.bf16.mxu0 0
        %1798 = vmatpush2.bf16.msra.mxu0 %v1587
        %1799 = vmatprep.subr.bf16.mxu0 0
        %1800 = vmatpush2.bf16.msra.mxu0 %v1586
        %1801 = vmatprep.subr.bf16.mxu0 0
        %1802 = vmatpush2.bf16.msra.mxu0 %v1585
        %1803 = vmatprep.subr.bf16.mxu0 0
        %1804 = vmatpush2.bf16.msra.mxu0 %v1584
        %1805 = vmatprep.subr.bf16.mxu0 0
        %1806 = vmatpush2.bf16.msra.mxu0 %v1583
        %1807 = vmatprep.subr.bf16.mxu0 0
        %1808 = vmatpush2.bf16.msra.mxu0 %v1582
        %1809 = vmatprep.subr.bf16.mxu0 0
        %1810 = vmatpush2.bf16.msra.mxu0 %v1581
        %1811 = vmatprep.subr.bf16.mxu0 0
        %1812 = vmatpush2.bf16.msra.mxu0 %v1580
        %1813 = vmatprep.mubr.bf16.mxu0 %v1303
        %1814 = vmatmul.mubr.bf16.gmra.mxu0 %v1302
        %v1815 = vpop.f32.mrf.mxu0
        %v1816 = vadd.f32 %v1655, %v1815
        %v1817 = vpop.f32.mrf.mxu0
        %v1818 = vpop.f32.mrf.mxu0
        %v1819 = vadd.f32 %v1658, %v1818
        %v1820 = vpop.f32.mrf.mxu0
        %1821 = vmatprep.mubr.bf16.mxu0 %v1307
        %1822 = vmatmul.mubr.bf16.gmra.mxu0 %v1306
        %v1823 = vpop.f32.mrf.mxu0
        %v1824 = vadd.f32 %v1663, %v1823
        %v1825 = vpop.f32.mrf.mxu0
        %v1826 = vpop.f32.mrf.mxu0
        %v1827 = vadd.f32 %v1666, %v1826
        %v1828 = vpop.f32.mrf.mxu0
        %1829 = vmatprep.mubr.bf16.mxu0 %v1311
        %1830 = vmatmul.mubr.bf16.gmra.mxu0 %v1310
        %v1831 = vpop.f32.mrf.mxu0
        %v1832 = vadd.f32 %v1671, %v1831
        %v1833 = vpop.f32.mrf.mxu0
        %v1834 = vpop.f32.mrf.mxu0
        %v1835 = vadd.f32 %v1674, %v1834
        %v1836 = vpop.f32.mrf.mxu0
        %1837 = vmatprep.mubr.bf16.mxu0 %v1315
        %1838 = vmatmul.mubr.bf16.gmra.mxu0 %v1314
        %v1839 = vpop.f32.mrf.mxu0
        %v1840 = vadd.f32 %v1679, %v1839
        %v1841 = vpop.f32.mrf.mxu0
        %v1842 = vpop.f32.mrf.mxu0
        %v1843 = vadd.f32 %v1682, %v1842
        %v1844 = vpop.f32.mrf.mxu0
        %1845 = vmatprep.mubr.bf16.mxu0 %v1319
        %1846 = vmatmul.mubr.bf16.gmra.mxu0 %v1318
        %v1847 = vpop.f32.mrf.mxu0
        %v1848 = vadd.f32 %v1687, %v1847
        %v1849 = vpop.f32.mrf.mxu0
        %v1850 = vpop.f32.mrf.mxu0
        %v1851 = vadd.f32 %v1690, %v1850
        %v1852 = vpop.f32.mrf.mxu0
        %1853 = vmatprep.mubr.bf16.mxu0 %v1323
        %1854 = vmatmul.mubr.bf16.gmra.mxu0 %v1322
        %v1855 = vpop.f32.mrf.mxu0
        %v1856 = vadd.f32 %v1695, %v1855
        %v1857 = vpop.f32.mrf.mxu0
        %v1858 = vpop.f32.mrf.mxu0
        %v1859 = vadd.f32 %v1698, %v1858
        %v1860 = vpop.f32.mrf.mxu0
        %1861 = vmatprep.mubr.bf16.mxu0 %v1327
        %1862 = vmatmul.mubr.bf16.gmra.mxu0 %v1326
        %v1863 = vpop.f32.mrf.mxu0
        %v1864 = vadd.f32 %v1703, %v1863
        %v1865 = vpop.f32.mrf.mxu0
        %v1866 = vpop.f32.mrf.mxu0
        %v1867 = vadd.f32 %v1706, %v1866
        %v1868 = vpop.f32.mrf.mxu0
        %1869 = vmatprep.mubr.bf16.mxu0 %v1331
        %1870 = vmatmul.mubr.bf16.gmra.mxu0 %v1330
        %v1871 = vpop.f32.mrf.mxu0
        %v1872 = vadd.f32 %v1711, %v1871
        %v1873 = vpop.f32.mrf.mxu0
        %v1874 = vpop.f32.mrf.mxu0
        %v1875 = vadd.f32 %v1714, %v1874
        %v1876 = vpop.f32.mrf.mxu0
        %1877 = vmatprep.mubr.bf16.mxu0 %v1335
        %1878 = vmatmul.mubr.bf16.gmra.mxu0 %v1334
        %v1879 = vpop.f32.mrf.mxu0
        %v1880 = vadd.f32 %v1719, %v1879
        %v1881 = vpop.f32.mrf.mxu0
        %v1882 = vpop.f32.mrf.mxu0
        %v1883 = vadd.f32 %v1722, %v1882
        %v1884 = vpop.f32.mrf.mxu0
        %1885 = vmatprep.mubr.bf16.mxu0 %v1339
        %1886 = vmatmul.mubr.bf16.gmra.mxu0 %v1338
        %v1887 = vpop.f32.mrf.mxu0
        %v1888 = vadd.f32 %v1727, %v1887
        %v1889 = vpop.f32.mrf.mxu0
        %v1890 = vpop.f32.mrf.mxu0
        %v1891 = vadd.f32 %v1730, %v1890
        %v1892 = vpop.f32.mrf.mxu0
        %1893 = vmatprep.mubr.bf16.mxu0 %v1343
        %1894 = vmatmul.mubr.bf16.gmra.mxu0 %v1342
        %v1895 = vpop.f32.mrf.mxu0
        %v1896 = vadd.f32 %v1735, %v1895
        %v1897 = vpop.f32.mrf.mxu0
        %v1898 = vpop.f32.mrf.mxu0
        %v1899 = vadd.f32 %v1738, %v1898
        %v1900 = vpop.f32.mrf.mxu0
        %1901 = vmatprep.mubr.bf16.mxu0 %v1347
        %1902 = vmatmul.mubr.bf16.gmra.mxu0 %v1346
        %v1903 = vpop.f32.mrf.mxu0
        %v1904 = vadd.f32 %v1743, %v1903
        %v1905 = vpop.f32.mrf.mxu0
        %v1906 = vpop.f32.mrf.mxu0
        %v1907 = vadd.f32 %v1746, %v1906
        %v1908 = vpop.f32.mrf.mxu0
        %1909 = vmatprep.mubr.bf16.mxu0 %v1351
        %1910 = vmatmul.mubr.bf16.gmra.mxu0 %v1350
        %v1911 = vpop.f32.mrf.mxu0
        %v1912 = vadd.f32 %v1751, %v1911
        %v1913 = vpop.f32.mrf.mxu0
        %v1914 = vpop.f32.mrf.mxu0
        %v1915 = vadd.f32 %v1754, %v1914
        %v1916 = vpop.f32.mrf.mxu0
        %1917 = vmatprep.mubr.bf16.mxu0 %v1355
        %1918 = vmatmul.mubr.bf16.gmra.mxu0 %v1354
        %v1919 = vpop.f32.mrf.mxu0
        %v1920 = vadd.f32 %v1759, %v1919
        %v1921 = vpop.f32.mrf.mxu0
        %v1922 = vpop.f32.mrf.mxu0
        %v1923 = vadd.f32 %v1762, %v1922
        %v1924 = vpop.f32.mrf.mxu0
        %1925 = vmatprep.mubr.bf16.mxu0 %v1359
        %1926 = vmatmul.mubr.bf16.gmra.mxu0 %v1358
        %v1927 = vpop.f32.mrf.mxu0
        %v1928 = vadd.f32 %v1767, %v1927
        %v1929 = vpop.f32.mrf.mxu0
        %v1930 = vpop.f32.mrf.mxu0
        %v1931 = vadd.f32 %v1770, %v1930
        %v1932 = vpop.f32.mrf.mxu0
        %1933 = vmatprep.mubr.bf16.mxu0 %v1363
        %1934 = vmatmul.mubr.bf16.gmra.mxu0 %v1362
        %v1935 = vpop.f32.mrf.mxu0
        %v1936 = vadd.f32 %v1775, %v1935
        %v1937 = vpop.f32.mrf.mxu0
        %v1938 = vpop.f32.mrf.mxu0
        %v1939 = vadd.f32 %v1778, %v1938
        %v1940 = vpop.f32.mrf.mxu0
        %1941 = vdwg.mxu0
        %v1942 = vadd.f32 %v1268, %v1816
        %v1943 = vadd.f32 %v1269, %v1819
        %v1944 = vadd.f32 %v1270, %v1824
        %v1945 = vadd.f32 %v1271, %v1827
        %v1946 = vadd.f32 %v1272, %v1832
        %v1947 = vadd.f32 %v1273, %v1835
        %v1948 = vadd.f32 %v1274, %v1840
        %v1949 = vadd.f32 %v1275, %v1843
        %v1950 = vadd.f32 %v1276, %v1848
        %v1951 = vadd.f32 %v1277, %v1851
        %v1952 = vadd.f32 %v1278, %v1856
        %v1953 = vadd.f32 %v1279, %v1859
        %v1954 = vadd.f32 %v1280, %v1864
        %v1955 = vadd.f32 %v1281, %v1867
        %v1956 = vadd.f32 %v1282, %v1872
        %v1957 = vadd.f32 %v1283, %v1875
        %v1958 = vadd.f32 %v1284, %v1880
        %v1959 = vadd.f32 %v1285, %v1883
        %v1960 = vadd.f32 %v1286, %v1888
        %v1961 = vadd.f32 %v1287, %v1891
        %v1962 = vadd.f32 %v1288, %v1896
        %v1963 = vadd.f32 %v1289, %v1899
        %v1964 = vadd.f32 %v1290, %v1904
        %v1965 = vadd.f32 %v1291, %v1907
        %v1966 = vadd.f32 %v1292, %v1912
        %v1967 = vadd.f32 %v1293, %v1915
        %v1968 = vadd.f32 %v1294, %v1920
        %v1969 = vadd.f32 %v1295, %v1923
        %v1970 = vadd.f32 %v1296, %v1928
        %v1971 = vadd.f32 %v1297, %v1931
        %v1972 = vadd.f32 %v1298, %v1936
        %v1973 = vadd.f32 %v1299, %v1939
        %1974 = vst [vmem:[#allocation2] sm:$0xff] %v1942
        %1975 = vst [vmem:[#allocation2 + $0x8] sm:$0xff] %v1943
        %1976 = vst [vmem:[#allocation2 + $0x10] sm:$0xff] %v1944
        %1977 = vst [vmem:[#allocation2 + $0x18] sm:$0xff] %v1945
        %1978 = vst [vmem:[#allocation2 + $0x20] sm:$0xff] %v1946
        %1979 = vst [vmem:[#allocation2 + $0x28] sm:$0xff] %v1947
        %1980 = vst [vmem:[#allocation2 + $0x30] sm:$0xff] %v1948
        %1981 = vst [vmem:[#allocation2 + $0x38] sm:$0xff] %v1949
        %1982 = vst [vmem:[#allocation2 + $0x40] sm:$0xff] %v1950
        %1983 = vst [vmem:[#allocation2 + $0x48] sm:$0xff] %v1951
        %1984 = vst [vmem:[#allocation2 + $0x50] sm:$0xff] %v1952
        %1985 = vst [vmem:[#allocation2 + $0x58] sm:$0xff] %v1953
        %1986 = vst [vmem:[#allocation2 + $0x60] sm:$0xff] %v1954
        %1987 = vst [vmem:[#allocation2 + $0x68] sm:$0xff] %v1955
        %1988 = vst [vmem:[#allocation2 + $0x70] sm:$0xff] %v1956
        %1989 = vst [vmem:[#allocation2 + $0x78] sm:$0xff] %v1957
        %1990 = vst [vmem:[#allocation2 + $0x80] sm:$0xff] %v1958
        %1991 = vst [vmem:[#allocation2 + $0x88] sm:$0xff] %v1959
        %1992 = vst [vmem:[#allocation2 + $0x90] sm:$0xff] %v1960
        %1993 = vst [vmem:[#allocation2 + $0x98] sm:$0xff] %v1961
        %1994 = vst [vmem:[#allocation2 + $0xa0] sm:$0xff] %v1962
        %1995 = vst [vmem:[#allocation2 + $0xa8] sm:$0xff] %v1963
        %1996 = vst [vmem:[#allocation2 + $0xb0] sm:$0xff] %v1964
        %1997 = vst [vmem:[#allocation2 + $0xb8] sm:$0xff] %v1965
        %1998 = vst [vmem:[#allocation2 + $0xc0] sm:$0xff] %v1966
        %1999 = vst [vmem:[#allocation2 + $0xc8] sm:$0xff] %v1967
        %2000 = vst [vmem:[#allocation2 + $0xd0] sm:$0xff] %v1968
        %2001 = vst [vmem:[#allocation2 + $0xd8] sm:$0xff] %v1969
        %2002 = vst [vmem:[#allocation2 + $0xe0] sm:$0xff] %v1970
        %2003 = vst [vmem:[#allocation2 + $0xe8] sm:$0xff] %v1971
        %2004 = vst [vmem:[#allocation2 + $0xf0] sm:$0xff] %v1972
        %2005 = vst [vmem:[#allocation2 + $0xf8] sm:$0xff] %v1973
        %p2006 = scmp.eq.s32.totalorder %s33, 1
        // Predicated region
        $region61: #{tpu_custom_call.1} parent=39 // pred_check
          %p2007 = pneg %p2006
        $region62: #{tpu_custom_call.1} parent=39 // pred_check_branch
          %2009 = sbr.rel (%p2007) target = $region64
        $region63: #{tpu_custom_call.1} parent=39 // pred_region
          %v2010 = vld [vmem:[#allocation2] sm:$0xff]
          %v2011 = vld [vmem:[#allocation2 + $0x8] sm:$0xff]
          %v2012 = vld [vmem:[#allocation2 + $0x10] sm:$0xff]
          %v2013 = vld [vmem:[#allocation2 + $0x18] sm:$0xff]
          %v2014 = vld [vmem:[#allocation2 + $0x20] sm:$0xff]
          %v2015 = vld [vmem:[#allocation2 + $0x28] sm:$0xff]
          %v2016 = vld [vmem:[#allocation2 + $0x30] sm:$0xff]
          %v2017 = vld [vmem:[#allocation2 + $0x38] sm:$0xff]
          %v2018 = vld [vmem:[#allocation2 + $0x40] sm:$0xff]
          %v2019 = vld [vmem:[#allocation2 + $0x48] sm:$0xff]
          %v2020 = vld [vmem:[#allocation2 + $0x50] sm:$0xff]
          %v2021 = vld [vmem:[#allocation2 + $0x58] sm:$0xff]
          %v2022 = vld [vmem:[#allocation2 + $0x60] sm:$0xff]
          %v2023 = vld [vmem:[#allocation2 + $0x68] sm:$0xff]
          %v2024 = vld [vmem:[#allocation2 + $0x70] sm:$0xff]
          %v2025 = vld [vmem:[#allocation2 + $0x78] sm:$0xff]
          %v2026 = vld [vmem:[#allocation2 + $0x80] sm:$0xff]
          %v2027 = vld [vmem:[#allocation2 + $0x88] sm:$0xff]
          %v2028 = vld [vmem:[#allocation2 + $0x90] sm:$0xff]
          %v2029 = vld [vmem:[#allocation2 + $0x98] sm:$0xff]
          %v2030 = vld [vmem:[#allocation2 + $0xa0] sm:$0xff]
          %v2031 = vld [vmem:[#allocation2 + $0xa8] sm:$0xff]
          %v2032 = vld [vmem:[#allocation2 + $0xb0] sm:$0xff]
          %v2033 = vld [vmem:[#allocation2 + $0xb8] sm:$0xff]
          %v2034 = vld [vmem:[#allocation2 + $0xc0] sm:$0xff]
          %v2035 = vld [vmem:[#allocation2 + $0xc8] sm:$0xff]
          %v2036 = vld [vmem:[#allocation2 + $0xd0] sm:$0xff]
          %v2037 = vld [vmem:[#allocation2 + $0xd8] sm:$0xff]
          %v2038 = vld [vmem:[#allocation2 + $0xe0] sm:$0xff]
          %v2039 = vld [vmem:[#allocation2 + $0xe8] sm:$0xff]
          %v2040 = vld [vmem:[#allocation2 + $0xf0] sm:$0xff]
          %v2041 = vld [vmem:[#allocation2 + $0xf8] sm:$0xff]
          %v2042 = vld [vmem:[%s4] sm:$0x1]
          %v2044 = vlaneseq
          %v2045 = vshrl.u32 %v2044, 7
          %v2046 = vsub.s32 0, %v2045
          %v2047 = vrot.slane %v2042, %v2046
          %v2049 = vadd.f32 %v2010, %v2047
          %v2050 = vadd.f32 %v2011, %v2047
          %v2051 = vadd.f32 %v2012, %v2047
          %v2052 = vadd.f32 %v2013, %v2047
          %v2053 = vadd.f32 %v2014, %v2047
          %v2054 = vadd.f32 %v2015, %v2047
          %v2055 = vadd.f32 %v2016, %v2047
          %v2056 = vadd.f32 %v2017, %v2047
          %v2057 = vadd.f32 %v2018, %v2047
          %v2058 = vadd.f32 %v2019, %v2047
          %v2059 = vadd.f32 %v2020, %v2047
          %v2060 = vadd.f32 %v2021, %v2047
          %v2061 = vadd.f32 %v2022, %v2047
          %v2062 = vadd.f32 %v2023, %v2047
          %v2063 = vadd.f32 %v2024, %v2047
          %v2064 = vadd.f32 %v2025, %v2047
          %v2065 = vadd.f32 %v2026, %v2047
          %v2066 = vadd.f32 %v2027, %v2047
          %v2067 = vadd.f32 %v2028, %v2047
          %v2068 = vadd.f32 %v2029, %v2047
          %v2069 = vadd.f32 %v2030, %v2047
          %v2070 = vadd.f32 %v2031, %v2047
          %v2071 = vadd.f32 %v2032, %v2047
          %v2072 = vadd.f32 %v2033, %v2047
          %v2073 = vadd.f32 %v2034, %v2047
          %v2074 = vadd.f32 %v2035, %v2047
          %v2075 = vadd.f32 %v2036, %v2047
          %v2076 = vadd.f32 %v2037, %v2047
          %v2077 = vadd.f32 %v2038, %v2047
          %v2078 = vadd.f32 %v2039, %v2047
          %v2079 = vadd.f32 %v2040, %v2047
          %v2080 = vadd.f32 %v2041, %v2047
          %v2081 = vpack.c.bf16 %v2050, %v2049
          %v2082 = vpack.c.bf16 %v2052, %v2051
          %v2083 = vpack.c.bf16 %v2054, %v2053
          %v2084 = vpack.c.bf16 %v2056, %v2055
          %v2085 = vpack.c.bf16 %v2058, %v2057
          %v2086 = vpack.c.bf16 %v2060, %v2059
          %v2087 = vpack.c.bf16 %v2062, %v2061
          %v2088 = vpack.c.bf16 %v2064, %v2063
          %v2089 = vpack.c.bf16 %v2066, %v2065
          %v2090 = vpack.c.bf16 %v2068, %v2067
          %v2091 = vpack.c.bf16 %v2070, %v2069
          %v2092 = vpack.c.bf16 %v2072, %v2071
          %v2093 = vpack.c.bf16 %v2074, %v2073
          %v2094 = vpack.c.bf16 %v2076, %v2075
          %v2095 = vpack.c.bf16 %v2078, %v2077
          %v2096 = vpack.c.bf16 %v2080, %v2079
          %v2113 = vunpack.c.l.b16 %v2081
          %v2114 = vunpack.c.h.b16 %v2081
          %v2115 = vunpack.c.l.b16 %v2082
          %v2116 = vunpack.c.h.b16 %v2082
          %v2117 = vunpack.c.l.b16 %v2083
          %v2118 = vunpack.c.h.b16 %v2083
          %v2119 = vunpack.c.l.b16 %v2084
          %v2120 = vunpack.c.h.b16 %v2084
          %v2121 = vunpack.c.l.b16 %v2085
          %v2122 = vunpack.c.h.b16 %v2085
          %v2123 = vunpack.c.l.b16 %v2086
          %v2124 = vunpack.c.h.b16 %v2086
          %v2125 = vunpack.c.l.b16 %v2087
          %v2126 = vunpack.c.h.b16 %v2087
          %v2127 = vunpack.c.l.b16 %v2088
          %v2128 = vunpack.c.h.b16 %v2088
          %v2129 = vunpack.c.l.b16 %v2089
          %v2130 = vunpack.c.h.b16 %v2089
          %v2131 = vunpack.c.l.b16 %v2090
          %v2132 = vunpack.c.h.b16 %v2090
          %v2133 = vunpack.c.l.b16 %v2091
          %v2134 = vunpack.c.h.b16 %v2091
          %v2135 = vunpack.c.l.b16 %v2092
          %v2136 = vunpack.c.h.b16 %v2092
          %v2137 = vunpack.c.l.b16 %v2093
          %v2138 = vunpack.c.h.b16 %v2093
          %v2139 = vunpack.c.l.b16 %v2094
          %v2140 = vunpack.c.h.b16 %v2094
          %v2141 = vunpack.c.l.b16 %v2095
          %v2142 = vunpack.c.h.b16 %v2095
          %v2143 = vunpack.c.l.b16 %v2096
          %v2144 = vunpack.c.h.b16 %v2096
          %v2145 = vpack.c.b16 %v2113, %v2113
          %v2146 = vpack.c.b16 %v2114, %v2114
          %v2147 = vpack.c.b16 %v2115, %v2115
          %v2148 = vpack.c.b16 %v2116, %v2116
          %v2149 = vpack.c.b16 %v2117, %v2117
          %v2150 = vpack.c.b16 %v2118, %v2118
          %v2151 = vpack.c.b16 %v2119, %v2119
          %v2152 = vpack.c.b16 %v2120, %v2120
          %v2153 = vpack.c.b16 %v2121, %v2121
          %v2154 = vpack.c.b16 %v2122, %v2122
          %v2155 = vpack.c.b16 %v2123, %v2123
          %v2156 = vpack.c.b16 %v2124, %v2124
          %v2157 = vpack.c.b16 %v2125, %v2125
          %v2158 = vpack.c.b16 %v2126, %v2126
          %v2159 = vpack.c.b16 %v2127, %v2127
          %v2160 = vpack.c.b16 %v2128, %v2128
          %v2161 = vpack.c.b16 %v2129, %v2129
          %v2162 = vpack.c.b16 %v2130, %v2130
          %v2163 = vpack.c.b16 %v2131, %v2131
          %v2164 = vpack.c.b16 %v2132, %v2132
          %v2165 = vpack.c.b16 %v2133, %v2133
          %v2166 = vpack.c.b16 %v2134, %v2134
          %v2167 = vpack.c.b16 %v2135, %v2135
          %v2168 = vpack.c.b16 %v2136, %v2136
          %v2169 = vpack.c.b16 %v2137, %v2137
          %v2170 = vpack.c.b16 %v2138, %v2138
          %v2171 = vpack.c.b16 %v2139, %v2139
          %v2172 = vpack.c.b16 %v2140, %v2140
          %v2173 = vpack.c.b16 %v2141, %v2141
          %v2174 = vpack.c.b16 %v2142, %v2142
          %v2175 = vpack.c.b16 %v2143, %v2143
          %v2176 = vpack.c.b16 %v2144, %v2144
          %2209 = vst [vmem:[%s369] sm:$0xf] %v2145
          %2210 = vst [vmem:[%s369 + $0x4] sm:$0xf] %v2146
          %2211 = vst [vmem:[%s369 + $0x8] sm:$0xf] %v2147
          %2212 = vst [vmem:[%s369 + $0xc] sm:$0xf] %v2148
          %2213 = vst [vmem:[%s369 + $0x10] sm:$0xf] %v2149
          %2214 = vst [vmem:[%s369 + $0x14] sm:$0xf] %v2150
          %2215 = vst [vmem:[%s369 + $0x18] sm:$0xf] %v2151
          %2216 = vst [vmem:[%s369 + $0x1c] sm:$0xf] %v2152
          %2217 = vst [vmem:[%s369 + $0x20] sm:$0xf] %v2153
          %2218 = vst [vmem:[%s369 + $0x24] sm:$0xf] %v2154
          %2219 = vst [vmem:[%s369 + $0x28] sm:$0xf] %v2155
          %2220 = vst [vmem:[%s369 + $0x2c] sm:$0xf] %v2156
          %2221 = vst [vmem:[%s369 + $0x30] sm:$0xf] %v2157
          %2222 = vst [vmem:[%s369 + $0x34] sm:$0xf] %v2158
          %2223 = vst [vmem:[%s369 + $0x38] sm:$0xf] %v2159
          %2224 = vst [vmem:[%s369 + $0x3c] sm:$0xf] %v2160
          %2225 = vst [vmem:[%s369 + $0x40] sm:$0xf] %v2161
          %2226 = vst [vmem:[%s369 + $0x44] sm:$0xf] %v2162
          %2227 = vst [vmem:[%s369 + $0x48] sm:$0xf] %v2163
          %2228 = vst [vmem:[%s369 + $0x4c] sm:$0xf] %v2164
          %2229 = vst [vmem:[%s369 + $0x50] sm:$0xf] %v2165
          %2230 = vst [vmem:[%s369 + $0x54] sm:$0xf] %v2166
          %2231 = vst [vmem:[%s369 + $0x58] sm:$0xf] %v2167
          %2232 = vst [vmem:[%s369 + $0x5c] sm:$0xf] %v2168
          %2233 = vst [vmem:[%s369 + $0x60] sm:$0xf] %v2169
          %2234 = vst [vmem:[%s369 + $0x64] sm:$0xf] %v2170
          %2235 = vst [vmem:[%s369 + $0x68] sm:$0xf] %v2171
          %2236 = vst [vmem:[%s369 + $0x6c] sm:$0xf] %v2172
          %2237 = vst [vmem:[%s369 + $0x70] sm:$0xf] %v2173
          %2238 = vst [vmem:[%s369 + $0x74] sm:$0xf] %v2174
          %2239 = vst [vmem:[%s369 + $0x78] sm:$0xf] %v2175
          %2240 = vst [vmem:[%s369 + $0x7c] sm:$0xf] %v2176
        $region64: #{tpu_custom_call.1} parent=39 // pred_fallthru
          _
        %s2241 = sand.u32 %s173, 1
        %s2242 = scalar_lea.sflag [#allocation5], %s2241
        %s2243 = sand.u32 %s173, 1
        %s2244 = smul.addr %s2243, 128
        %s2245 = scalar_lea.vmem [#allocation11], %s2244
        // Predicated region
        $region65: #{tpu_custom_call.1} parent=39 // pred_check
          %p2246 = pneg %p183
        $region66: #{tpu_custom_call.1} parent=39 // pred_check_branch
          %2248 = sbr.rel (%p2246) target = $region68
        $region67: #{tpu_custom_call.1} parent=39 // pred_region
          %s2249 = smul.u32 32, %s32
          %s2251 = ssub.s32 2048, 2048
          %2252 = vsyncadd %s2242, %s2251
          %s2253 = smul.addr %s2249, 64
          %s2254 = scalar_lea.hbm %s5, %s2253
          %s2255 = sshll.u32 %s2245, 4
          %s2256 = int_to_ptr.vmem [resolvable:$true] %s2255
          %2261 = dma.vmem_to_hbm [thread:$0]  %s2256, 2048, %s2254, %s2242, 64, 64, 4
        $region68: #{tpu_custom_call.1} parent=39 // pred_fallthru
          _
      $region40: #{tpu_custom_call.1} parent=5 // pred_fallthru
        _
      %p2262 = scmp.le.s32.totalorder 2, %s23
      // Predicated region
      $region69: #{tpu_custom_call.1} parent=5 // pred_check
        %p2263 = pneg %p2262
      $region70: #{tpu_custom_call.1} parent=5 // pred_check_branch
        %2265 = sbr.rel (%p2263) target = $region72
      $region71: #{tpu_custom_call.1} parent=5 // pred_region
        %s2266 = ssub.s32 %s23, 2
        // Predicated region
        $region73: #{tpu_custom_call.1} parent=71 // pred_check
          %p2267 = pneg %p189
        $region74: #{tpu_custom_call.1} parent=71 // pred_check_branch
          %2269 = sbr.rel (%p2267) target = $region76
        $region75: #{tpu_custom_call.1} parent=71 // pred_region
          %s2270 = sand.u32 %s174, 1
          %s2271 = scalar_lea.sflag [#allocation5], %s2270
          %s2272 = sand.u32 %s174, 1
          %s2273 = smul.addr %s2272, 128
          %s2274 = scalar_lea.vmem [#allocation11], %s2273
          %2275 = dma.done %s2271, 2048
        $region76: #{tpu_custom_call.1} parent=71 // pred_fallthru
          _
      $region72: #{tpu_custom_call.1} parent=5 // pred_fallthru
        _
    $region6: #{tpu_custom_call.1} parent=1 // loop_footer
      %s27 = sadd.s32 1, %s23
    $region7: #{tpu_custom_call.1} parent=1 // loop_footer_branch
      %22 = sbr.rel target = $region3
    $region8: #{tpu_custom_call.1} parent=1 // loop_exit
      _
    %2276 = vsyncpa [#allocation4], 1
    %s2277 = scalar_lea.sflag [#allocation4], 1
    %2278 = vsyncpa %s2277, 1
    %2279 = vsyncpa [#allocation7], 1
    %s2280 = scalar_lea.sflag [#allocation7], 1
    %2281 = vsyncpa %s2280, 1
    %2282 = vsyncpa [#allocation10], 1
    %s2283 = scalar_lea.sflag [#allocation10], 1
    %2284 = vsyncpa %s2283, 1
    %2285 = vsyncpa [#allocation5], 1
    %s2286 = scalar_lea.sflag [#allocation5], 1
    %2287 = vsyncpa %s2286, 1

</llo_original>
